<compile_context>
chip_gen: v7x
topology: tpu7x:2x2x1
jax: 0.10.0
libtpu: 0.0.40
codegen_flags: <defaults>
</compile_context>

<pallas_src>
import jax
import jax.numpy as jnp
import numpy as np
from jax.experimental import pallas as pl
from jax.experimental.pallas import tpu as pltpu

LEAKY_A = 0.1
H_LOGICAL = 50            # hidden width of the PyTorch module
H_PAD = 64                # sublane-aligned padded hidden width (zero padding, inert)
H_SIZES = [H_LOGICAL] * 5


# ----------------------------- Pallas kernel ------------------------------ #
def flow_kernel(z_ref, m_ref, w_in_ref, w_hid_ref, b_mlp_ref, w_out_ref, b_out_ref,
                x_ref, ld_ref, z_acc, ld_acc):
    t = pl.program_id(0)

    @pl.when(t == 0)
    def _init():
        z_acc[...] = z_ref[...]
        ld_acc[...] = jnp.zeros_like(ld_acc)

    z = z_acc[...]                       # (B, D) current flow state (VMEM resident)
    m = m_ref[...]                       # (B, D) Bernoulli mask for this transform
    one_minus_m = 1.0 - m
    z1 = one_minus_m * z
    z2 = m * z

    def lrelu(h):
        return jnp.where(h > 0, h, LEAKY_A * h)

    # MLP: 5 Linears, LeakyReLU after the first four (last activation dropped).
    y = lrelu(jnp.dot(z2, w_in_ref[...], preferred_element_type=jnp.float32)
              + b_mlp_ref[0])                          # (B, H_PAD)
    for i in range(4):
        h = jnp.dot(y, w_hid_ref[i], preferred_element_type=jnp.float32) + b_mlp_ref[i + 1]
        y = lrelu(h) if i < 3 else h

    # t / s heads
    shift = jnp.dot(y, w_out_ref[0], preferred_element_type=jnp.float32) + b_out_ref[0]
    scale = jnp.dot(y, w_out_ref[1], preferred_element_type=jnp.float32) + b_out_ref[1]

    gate = jax.nn.sigmoid(scale)
    # Stable log(sigmoid(scale)): min(x,0) - log(1 + exp(-|x|)); avoids log(0) = -inf.
    log_gate = jnp.minimum(scale, 0.0) - jnp.log(1.0 + jnp.exp(-jnp.abs(scale)))

    # Affine coupling update + running log-det.
    z_acc[...] = z1 * gate + (1.0 - gate) * shift + z2
    ld_acc[...] = ld_acc[...] + jnp.sum(one_minus_m * log_gate, axis=-1, keepdims=True)

    @pl.when(t == pl.num_programs(0) - 1)
    def _finalize():
        x_ref[...] = z_acc[...]
        ld_ref[...] = ld_acc[...]


# ------------------------------- wrapper ----------------------------------- #
def propagate_flow(z, masks, packed):
    """Fused flow. z: (B, D); masks: (T, B, D); packed: stacked padded params.

    Returns (x, logdet) with shapes (B, D), (B,)."""
    B, D = z.shape
    T = masks.shape[0]
    w_in, w_hid, b_mlp, w_out, b_out = packed
    HP = w_in.shape[-1]

    in_specs = [
        pl.BlockSpec((B, D), lambda t: (0, 0)),                              # z (fetched once)
        pl.BlockSpec((pl.Squeezed(), B, D), lambda t: (t, 0, 0)),            # mask[t]
        pl.BlockSpec((pl.Squeezed(), D, HP), lambda t: (t, 0, 0)),           # w_in[t]
        pl.BlockSpec((pl.Squeezed(), 4, HP, HP), lambda t: (t, 0, 0, 0)),    # w_hid[t]
        pl.BlockSpec((pl.Squeezed(), 5, 1, HP), lambda t: (t, 0, 0, 0)),     # b_mlp[t]
        pl.BlockSpec((pl.Squeezed(), 2, HP, D), lambda t: (t, 0, 0, 0)),     # w_out[t]
        pl.BlockSpec((pl.Squeezed(), 2, 1, D), lambda t: (t, 0, 0, 0)),      # b_out[t]
    ]
    out_specs = (
        pl.BlockSpec((B, D), lambda t: (0, 0)),   # x   (written once, at t == T-1)
        pl.BlockSpec((B, 1), lambda t: (0, 0)),   # logdet
    )

    x, ld = pl.pallas_call(
        flow_kernel,
        out_shape=(
            jax.ShapeDtypeStruct((B, D), jnp.float32),
            jax.ShapeDtypeStruct((B, 1), jnp.float32),
        ),
        grid=(T,),
        in_specs=in_specs,
        out_specs=out_specs,
        scratch_shapes=[
            pltpu.VMEM((B, D), jnp.float32),   # running z
            pltpu.VMEM((B, 1), jnp.float32),   # running logdet
        ],
        compiler_params=pltpu.CompilerParams(
            dimension_semantics=("arbitrary",),   # z/logdet carried across transforms
        ),
    )(z, masks, w_in, w_hid, b_mlp, w_out, b_out)
    return x, ld[:, 0]


# ----------------------------- parameter init ----------------------------- #
def make_rnvp_params(key, dim, h_sizes=H_SIZES):
    """Deterministic synthetic init. Returns flat tuple (w0,b0,...,w4,b4,wt,bt,ws,bs)
    with logical (unpadded) shapes, weights pre-transposed to (in, out)."""
    sizes = [dim] + list(h_sizes)
    flat = []
    for (s1, s2) in zip(sizes, sizes[1:]):
        key, kw, kb = jax.random.split(key, 3)
        w = jax.random.normal(kw, (s1, s2), jnp.float32) / jnp.sqrt(jnp.float32(s1))
        b = 0.01 * jax.random.normal(kb, (1, s2), jnp.float32)
        flat += [w, b]
    for _ in range(2):   # t head, s head
        key, kw, kb = jax.random.split(key, 3)
        w = jax.random.normal(kw, (h_sizes[-1], dim), jnp.float32) / jnp.sqrt(
            jnp.float32(h_sizes[-1]))
        b = 0.01 * jax.random.normal(kb, (1, dim), jnp.float32)
        flat += [w, b]
    return tuple(flat)


def pack_params(all_params, dim, h=H_LOGICAL, hp=H_PAD):
    """Stack per-transform params into 5 padded buffers for the fused kernel."""
    T = len(all_params)
    w_in = np.zeros((T, dim, hp), np.float32)
    w_hid = np.zeros((T, 4, hp, hp), np.float32)
    b_mlp = np.zeros((T, 5, 1, hp), np.float32)
    w_out = np.zeros((T, 2, hp, dim), np.float32)
    b_out = np.zeros((T, 2, 1, dim), np.float32)
    for t, p in enumerate(all_params):
        p = [np.asarray(a) for a in p]
        w_in[t, :, :h] = p[0]
        b_mlp[t, 0, 0, :h] = p[1][0]
        for i in range(4):
            w_hid[t, i, :h, :h] = p[2 + 2 * i]
            b_mlp[t, i + 1, 0, :h] = p[3 + 2 * i][0]
        w_out[t, 0, :h, :] = p[10]
        b_out[t, 0, 0, :] = p[11][0]
        w_out[t, 1, :h, :] = p[12]
        b_out[t, 1, 0, :] = p[13][0]
    return tuple(jnp.asarray(a) for a in (w_in, w_hid, b_mlp, w_out, b_out))


# --------------------------- pure-JAX reference ---------------------------- #
def _rnvp_ref(z, mask, params):
    ws = params
    z1 = (1.0 - mask) * z
    z2 = mask * z
    y = z2
    for i in range(5):
        w, b = ws[2 * i], ws[2 * i + 1]
        y = y @ w + b
        if i < 4:
            y = jnp.where(y > 0, y, LEAKY_A * y)
    wt, bt, wsc, bsc = ws[10], ws[11], ws[12], ws[13]
    shift = y @ wt + bt
    scale = y @ wsc + bsc
    gate = jax.nn.sigmoid(scale)
    x = z1 * gate + (1.0 - gate) * shift + z2
    ld = jnp.sum((1.0 - mask) * jnp.log(gate), axis=-1)
    return x, ld


def _flow_ref(z, all_params, masks):
    logdet = jnp.zeros((z.shape[0],), jnp.float32)
    for params, mask in zip(all_params, masks):
        z, ld = _rnvp_ref(z, mask, params)
        logdet = logdet + ld
    return z, logdet


# ---------------------------------- main ----------------------------------- #
if __name__ == "__main__":
    B, D = 8, 16
    NUM_TRANSFORMS = 3

    root = jax.random.PRNGKey(0)
    kz, kp, km = jax.random.split(root, 3)

    z0 = jax.random.normal(kz, (B, D), jnp.float32)

    all_params = tuple(
        make_rnvp_params(jax.random.fold_in(kp, i), D) for i in range(NUM_TRANSFORMS)
    )
    # torch.bernoulli(0.5 * ones_like(z)) per transform, sampled in the wrapper.
    masks = jnp.stack([
        jax.random.bernoulli(jax.random.fold_in(km, i), 0.5, (B, D)).astype(jnp.float32)
        for i in range(NUM_TRANSFORMS)
    ])

    packed = pack_params(all_params, D)

    x, logdet = propagate_flow(z0, masks, packed)
    jax.block_until_ready((x, logdet))

    x_ref, ld_ref = _flow_ref(z0, all_params, [masks[i] for i in range(NUM_TRANSFORMS)])
    np.testing.assert_allclose(np.asarray(x), np.asarray(x_ref), rtol=1e-3, atol=1e-3)
    np.testing.assert_allclose(np.asarray(logdet), np.asarray(ld_ref), rtol=1e-3, atol=1e-3)

    print("KERNEL_OK")
</pallas_src>

<mosaic_0001>
module attributes {stable_mosaic.version = 11 : i64} {
  func.func @flow_kernel(%arg0: i32, %arg1: memref<8x16xf32, #tpu.memory_space<vmem>>, %arg2: memref<1x8x16xf32, #tpu.memory_space<vmem>>, %arg3: memref<1x16x64xf32, #tpu.memory_space<vmem>>, %arg4: memref<1x4x64x64xf32, #tpu.memory_space<vmem>>, %arg5: memref<1x5x1x64xf32, #tpu.memory_space<vmem>>, %arg6: memref<1x2x64x16xf32, #tpu.memory_space<vmem>>, %arg7: memref<1x2x1x16xf32, #tpu.memory_space<vmem>>, %arg8: memref<8x16xf32, #tpu.memory_space<vmem>>, %arg9: memref<8x1xf32, #tpu.memory_space<vmem>>, %arg10: memref<8x16xf32, #tpu.memory_space<vmem>>, %arg11: memref<8x1xf32, #tpu.memory_space<vmem>>) attributes {dimension_semantics = [#tpu.dimension_semantics<arbitrary>], iteration_bounds = array<i64: 3>, scalar_prefetch = 0 : i64, scratch_operands = 2 : i64, tpu.core_type = #tpu.core_type<tc>, window_params = [{pipeline_mode = #tpu.pipeline_mode<synchronous>, transform_indices = @transform_0, window_bounds = array<i64: 8, 16>}, {transform_indices = @transform_1, window_bounds = array<i64: 1, 8, 16>}, {transform_indices = @transform_2, window_bounds = array<i64: 1, 16, 64>}, {transform_indices = @transform_3, window_bounds = array<i64: 1, 4, 64, 64>}, {transform_indices = @transform_4, window_bounds = array<i64: 1, 5, 1, 64>}, {transform_indices = @transform_5, window_bounds = array<i64: 1, 2, 64, 16>}, {transform_indices = @transform_6, window_bounds = array<i64: 1, 2, 1, 16>}, {pipeline_mode = #tpu.pipeline_mode<synchronous>, transform_indices = @transform_7, window_bounds = array<i64: 8, 16>}, {pipeline_mode = #tpu.pipeline_mode<synchronous>, transform_indices = @transform_8, window_bounds = array<i64: 8, 1>}]} {
    %c0_i32 = arith.constant 0 : i32
    %0 = arith.cmpi eq, %arg0, %c0_i32 : i32
    %1 = arith.extui %0 : i1 to i32
    %c0_i32_0 = arith.constant 0 : i32
    %2 = arith.cmpi ne, %1, %c0_i32_0 : i32
    scf.if %2 {
      %c0_84 = arith.constant 0 : index
      %c0_85 = arith.constant 0 : index
      %110 = vector.load %arg1[%c0_84, %c0_85] : memref<8x16xf32, #tpu.memory_space<vmem>>, vector<8x16xf32>
      %c0_86 = arith.constant 0 : index
      %c0_87 = arith.constant 0 : index
      %111 = vector.load %arg10[%c0_86, %c0_87] : memref<8x16xf32, #tpu.memory_space<vmem>>, vector<8x16xf32>
      tpu.vector_store %arg10[%c0_86, %c0_87], %110 {strides = array<i32>} : memref<8x16xf32, #tpu.memory_space<vmem>>, vector<8x16xf32>,
      %cst_88 = arith.constant 0.000000e+00 : f32
      %112 = vector.broadcast %cst_88 : f32 to vector<8x1xf32>
      %c0_89 = arith.constant 0 : index
      %c0_90 = arith.constant 0 : index
      %113 = vector.load %arg11[%c0_89, %c0_90] : memref<8x1xf32, #tpu.memory_space<vmem>>, vector<8x1xf32>
      tpu.vector_store %arg11[%c0_89, %c0_90], %112 {strides = array<i32>} : memref<8x1xf32, #tpu.memory_space<vmem>>, vector<8x1xf32>,
    } else {
    }
    %c0 = arith.constant 0 : index
    %c0_1 = arith.constant 0 : index
    %3 = vector.load %arg10[%c0, %c0_1] : memref<8x16xf32, #tpu.memory_space<vmem>>, vector<8x16xf32>
    %c0_2 = arith.constant 0 : index
    %c0_3 = arith.constant 0 : index
    %c0_4 = arith.constant 0 : index
    %4 = vector.load %arg2[%c0_2, %c0_3, %c0_4] : memref<1x8x16xf32, #tpu.memory_space<vmem>>, vector<1x8x16xf32>
    %5 = vector.shape_cast %4 : vector<1x8x16xf32> to vector<8x16xf32>
    %cst = arith.constant 1.000000e+00 : f32
    %6 = vector.broadcast %cst : f32 to vector<8x16xf32>
    %7 = arith.subf %6, %5 : vector<8x16xf32>
    %8 = arith.mulf %7, %3 : vector<8x16xf32>
    %9 = arith.mulf %5, %3 : vector<8x16xf32>
    %c0_5 = arith.constant 0 : index
    %c0_6 = arith.constant 0 : index
    %c0_7 = arith.constant 0 : index
    %10 = vector.load %arg3[%c0_5, %c0_6, %c0_7] : memref<1x16x64xf32, #tpu.memory_space<vmem>>, vector<1x16x64xf32>
    %11 = vector.shape_cast %10 : vector<1x16x64xf32> to vector<16x64xf32>
    %cst_8 = arith.constant dense<0.000000e+00> : vector<8x64xf32>
    %12 = tpu.matmul %9, %11, %cst_8 {dimension_numbers = #tpu.dot_dimension_numbers<[1], [0], [0], [1], [0, 0, 1, 1], [], []>} : vector<8x16xf32>, vector<16x64xf32>, vector<8x64xf32> -> vector<8x64xf32>
    %c0_9 = arith.constant 0 : index
    %c0_10 = arith.constant 0 : index
    %c0_11 = arith.constant 0 : index
    %c0_12 = arith.constant 0 : index
    %13 = vector.load %arg5[%c0_9, %c0_10, %c0_11, %c0_12] : memref<1x5x1x64xf32, #tpu.memory_space<vmem>>, vector<1x1x1x64xf32>
    %14 = vector.shape_cast %13 : vector<1x1x1x64xf32> to vector<1x64xf32>
    %15 = vector.broadcast %14 : vector<1x64xf32> to vector<8x64xf32>
    %16 = arith.addf %12, %15 : vector<8x64xf32>
    %cst_13 = arith.constant 0.000000e+00 : f32
    %17 = vector.broadcast %cst_13 : f32 to vector<8x64xf32>
    %18 = arith.cmpf ogt, %16, %17 : vector<8x64xf32>
    %cst_14 = arith.constant 1.000000e-01 : f32
    %19 = vector.broadcast %cst_14 : f32 to vector<8x64xf32>
    %20 = arith.mulf %19, %16 : vector<8x64xf32>
    %21 = arith.select %18, %16, %20 : vector<8x64xi1>, vector<8x64xf32>
    %c0_15 = arith.constant 0 : index
    %c0_16 = arith.constant 0 : index
    %c0_17 = arith.constant 0 : index
    %c0_18 = arith.constant 0 : index
    %22 = vector.load %arg4[%c0_15, %c0_16, %c0_17, %c0_18] : memref<1x4x64x64xf32, #tpu.memory_space<vmem>>, vector<1x1x64x64xf32>
    %23 = vector.shape_cast %22 : vector<1x1x64x64xf32> to vector<64x64xf32>
    %cst_19 = arith.constant dense<0.000000e+00> : vector<8x64xf32>
    %24 = tpu.matmul %21, %23, %cst_19 {dimension_numbers = #tpu.dot_dimension_numbers<[1], [0], [0], [1], [0, 0, 1, 1], [], []>} : vector<8x64xf32>, vector<64x64xf32>, vector<8x64xf32> -> vector<8x64xf32>
    %c0_20 = arith.constant 0 : index
    %c1 = arith.constant 1 : index
    %c0_21 = arith.constant 0 : index
    %c0_22 = arith.constant 0 : index
    %25 = vector.load %arg5[%c0_20, %c1, %c0_21, %c0_22] : memref<1x5x1x64xf32, #tpu.memory_space<vmem>>, vector<1x1x1x64xf32>
    %26 = vector.shape_cast %25 : vector<1x1x1x64xf32> to vector<1x64xf32>
    %27 = vector.broadcast %26 : vector<1x64xf32> to vector<8x64xf32>
    %28 = arith.addf %24, %27 : vector<8x64xf32>
    %cst_23 = arith.constant 0.000000e+00 : f32
    %29 = vector.broadcast %cst_23 : f32 to vector<8x64xf32>
    %30 = arith.cmpf ogt, %28, %29 : vector<8x64xf32>
    %cst_24 = arith.constant 1.000000e-01 : f32
    %31 = vector.broadcast %cst_24 : f32 to vector<8x64xf32>
    %32 = arith.mulf %31, %28 : vector<8x64xf32>
    %33 = arith.select %30, %28, %32 : vector<8x64xi1>, vector<8x64xf32>
    %c0_25 = arith.constant 0 : index
    %c1_26 = arith.constant 1 : index
    %c0_27 = arith.constant 0 : index
    %c0_28 = arith.constant 0 : index
    %34 = vector.load %arg4[%c0_25, %c1_26, %c0_27, %c0_28] : memref<1x4x64x64xf32, #tpu.memory_space<vmem>>, vector<1x1x64x64xf32>
    %35 = vector.shape_cast %34 : vector<1x1x64x64xf32> to vector<64x64xf32>
    %cst_29 = arith.constant dense<0.000000e+00> : vector<8x64xf32>
    %36 = tpu.matmul %33, %35, %cst_29 {dimension_numbers = #tpu.dot_dimension_numbers<[1], [0], [0], [1], [0, 0, 1, 1], [], []>} : vector<8x64xf32>, vector<64x64xf32>, vector<8x64xf32> -> vector<8x64xf32>
    %c0_30 = arith.constant 0 : index
    %c2 = arith.constant 2 : index
    %c0_31 = arith.constant 0 : index
    %c0_32 = arith.constant 0 : index
    %37 = vector.load %arg5[%c0_30, %c2, %c0_31, %c0_32] : memref<1x5x1x64xf32, #tpu.memory_space<vmem>>, vector<1x1x1x64xf32>
    %38 = vector.shape_cast %37 : vector<1x1x1x64xf32> to vector<1x64xf32>
    %39 = vector.broadcast %38 : vector<1x64xf32> to vector<8x64xf32>
    %40 = arith.addf %36, %39 : vector<8x64xf32>
    %cst_33 = arith.constant 0.000000e+00 : f32
    %41 = vector.broadcast %cst_33 : f32 to vector<8x64xf32>
    %42 = arith.cmpf ogt, %40, %41 : vector<8x64xf32>
    %cst_34 = arith.constant 1.000000e-01 : f32
    %43 = vector.broadcast %cst_34 : f32 to vector<8x64xf32>
    %44 = arith.mulf %43, %40 : vector<8x64xf32>
    %45 = arith.select %42, %40, %44 : vector<8x64xi1>, vector<8x64xf32>
    %c0_35 = arith.constant 0 : index
    %c2_36 = arith.constant 2 : index
    %c0_37 = arith.constant 0 : index
    %c0_38 = arith.constant 0 : index
    %46 = vector.load %arg4[%c0_35, %c2_36, %c0_37, %c0_38] : memref<1x4x64x64xf32, #tpu.memory_space<vmem>>, vector<1x1x64x64xf32>
    %47 = vector.shape_cast %46 : vector<1x1x64x64xf32> to vector<64x64xf32>
    %cst_39 = arith.constant dense<0.000000e+00> : vector<8x64xf32>
    %48 = tpu.matmul %45, %47, %cst_39 {dimension_numbers = #tpu.dot_dimension_numbers<[1], [0], [0], [1], [0, 0, 1, 1], [], []>} : vector<8x64xf32>, vector<64x64xf32>, vector<8x64xf32> -> vector<8x64xf32>
    %c0_40 = arith.constant 0 : index
    %c3 = arith.constant 3 : index
    %c0_41 = arith.constant 0 : index
    %c0_42 = arith.constant 0 : index
    %49 = vector.load %arg5[%c0_40, %c3, %c0_41, %c0_42] : memref<1x5x1x64xf32, #tpu.memory_space<vmem>>, vector<1x1x1x64xf32>
    %50 = vector.shape_cast %49 : vector<1x1x1x64xf32> to vector<1x64xf32>
    %51 = vector.broadcast %50 : vector<1x64xf32> to vector<8x64xf32>
    %52 = arith.addf %48, %51 : vector<8x64xf32>
    %cst_43 = arith.constant 0.000000e+00 : f32
    %53 = vector.broadcast %cst_43 : f32 to vector<8x64xf32>
    %54 = arith.cmpf ogt, %52, %53 : vector<8x64xf32>
    %cst_44 = arith.constant 1.000000e-01 : f32
    %55 = vector.broadcast %cst_44 : f32 to vector<8x64xf32>
    %56 = arith.mulf %55, %52 : vector<8x64xf32>
    %57 = arith.select %54, %52, %56 : vector<8x64xi1>, vector<8x64xf32>
    %c0_45 = arith.constant 0 : index
    %c3_46 = arith.constant 3 : index
    %c0_47 = arith.constant 0 : index
    %c0_48 = arith.constant 0 : index
    %58 = vector.load %arg4[%c0_45, %c3_46, %c0_47, %c0_48] : memref<1x4x64x64xf32, #tpu.memory_space<vmem>>, vector<1x1x64x64xf32>
    %59 = vector.shape_cast %58 : vector<1x1x64x64xf32> to vector<64x64xf32>
    %cst_49 = arith.constant dense<0.000000e+00> : vector<8x64xf32>
    %60 = tpu.matmul %57, %59, %cst_49 {dimension_numbers = #tpu.dot_dimension_numbers<[1], [0], [0], [1], [0, 0, 1, 1], [], []>} : vector<8x64xf32>, vector<64x64xf32>, vector<8x64xf32> -> vector<8x64xf32>
    %c0_50 = arith.constant 0 : index
    %c4 = arith.constant 4 : index
    %c0_51 = arith.constant 0 : index
    %c0_52 = arith.constant 0 : index
    %61 = vector.load %arg5[%c0_50, %c4, %c0_51, %c0_52] : memref<1x5x1x64xf32, #tpu.memory_space<vmem>>, vector<1x1x1x64xf32>
    %62 = vector.shape_cast %61 : vector<1x1x1x64xf32> to vector<1x64xf32>
    %63 = vector.broadcast %62 : vector<1x64xf32> to vector<8x64xf32>
    %64 = arith.addf %60, %63 : vector<8x64xf32>
    %c0_53 = arith.constant 0 : index
    %c0_54 = arith.constant 0 : index
    %c0_55 = arith.constant 0 : index
    %c0_56 = arith.constant 0 : index
    %65 = vector.load %arg6[%c0_53, %c0_54, %c0_55, %c0_56] : memref<1x2x64x16xf32, #tpu.memory_space<vmem>>, vector<1x1x64x16xf32>
    %66 = vector.shape_cast %65 : vector<1x1x64x16xf32> to vector<64x16xf32>
    %cst_57 = arith.constant dense<0.000000e+00> : vector<8x16xf32>
    %67 = tpu.matmul %64, %66, %cst_57 {dimension_numbers = #tpu.dot_dimension_numbers<[1], [0], [0], [1], [0, 0, 1, 1], [], []>} : vector<8x64xf32>, vector<64x16xf32>, vector<8x16xf32> -> vector<8x16xf32>
    %c0_58 = arith.constant 0 : index
    %c0_59 = arith.constant 0 : index
    %c0_60 = arith.constant 0 : index
    %c0_61 = arith.constant 0 : index
    %68 = vector.load %arg7[%c0_58, %c0_59, %c0_60, %c0_61] : memref<1x2x1x16xf32, #tpu.memory_space<vmem>>, vector<1x1x1x16xf32>
    %69 = vector.shape_cast %68 : vector<1x1x1x16xf32> to vector<1x16xf32>
    %70 = vector.broadcast %69 : vector<1x16xf32> to vector<8x16xf32>
    %71 = arith.addf %67, %70 : vector<8x16xf32>
    %c0_62 = arith.constant 0 : index
    %c1_63 = arith.constant 1 : index
    %c0_64 = arith.constant 0 : index
    %c0_65 = arith.constant 0 : index
    %72 = vector.load %arg6[%c0_62, %c1_63, %c0_64, %c0_65] : memref<1x2x64x16xf32, #tpu.memory_space<vmem>>, vector<1x1x64x16xf32>
    %73 = vector.shape_cast %72 : vector<1x1x64x16xf32> to vector<64x16xf32>
    %cst_66 = arith.constant dense<0.000000e+00> : vector<8x16xf32>
    %74 = tpu.matmul %64, %73, %cst_66 {dimension_numbers = #tpu.dot_dimension_numbers<[1], [0], [0], [1], [0, 0, 1, 1], [], []>} : vector<8x64xf32>, vector<64x16xf32>, vector<8x16xf32> -> vector<8x16xf32>
    %c0_67 = arith.constant 0 : index
    %c1_68 = arith.constant 1 : index
    %c0_69 = arith.constant 0 : index
    %c0_70 = arith.constant 0 : index
    %75 = vector.load %arg7[%c0_67, %c1_68, %c0_69, %c0_70] : memref<1x2x1x16xf32, #tpu.memory_space<vmem>>, vector<1x1x1x16xf32>
    %76 = vector.shape_cast %75 : vector<1x1x1x16xf32> to vector<1x16xf32>
    %77 = vector.broadcast %76 : vector<1x16xf32> to vector<8x16xf32>
    %78 = arith.addf %74, %77 : vector<8x16xf32>
    %79 = arith.negf %78 : vector<8x16xf32>
    %80 = math.exp %79 : vector<8x16xf32>
    %cst_71 = arith.constant 1.000000e+00 : f32
    %81 = vector.broadcast %cst_71 : f32 to vector<8x16xf32>
    %82 = arith.addf %81, %80 : vector<8x16xf32>
    %83 = arith.divf %81, %82 : vector<8x16xf32>
    %cst_72 = arith.constant 0.000000e+00 : f32
    %84 = vector.broadcast %cst_72 : f32 to vector<8x16xf32>
    %85 = arith.minimumf %78, %84 : vector<8x16xf32>
    %86 = math.absf %78 : vector<8x16xf32>
    %cst_73 = arith.constant 0.000000e+00 : f32
    %87 = vector.broadcast %cst_73 : f32 to vector<8x16xf32>
    %88 = arith.subf %87, %86 : vector<8x16xf32>
    %89 = math.exp %88 : vector<8x16xf32>
    %cst_74 = arith.constant 1.000000e+00 : f32
    %90 = vector.broadcast %cst_74 : f32 to vector<8x16xf32>
    %91 = arith.addf %90, %89 : vector<8x16xf32>
    %92 = math.log %91 : vector<8x16xf32>
    %93 = arith.subf %85, %92 : vector<8x16xf32>
    %94 = arith.mulf %8, %83 : vector<8x16xf32>
    %cst_75 = arith.constant 1.000000e+00 : f32
    %95 = vector.broadcast %cst_75 : f32 to vector<8x16xf32>
    %96 = arith.subf %95, %83 : vector<8x16xf32>
    %97 = arith.mulf %96, %71 : vector<8x16xf32>
    %98 = arith.addf %94, %97 : vector<8x16xf32>
    %99 = arith.addf %98, %9 : vector<8x16xf32>
    %c0_76 = arith.constant 0 : index
    %c0_77 = arith.constant 0 : index
    %100 = vector.load %arg10[%c0_76, %c0_77] : memref<8x16xf32, #tpu.memory_space<vmem>>, vector<8x16xf32>
    tpu.vector_store %arg10[%c0_76, %c0_77], %99 {strides = array<i32>} : memref<8x16xf32, #tpu.memory_space<vmem>>, vector<8x16xf32>,
    %c0_78 = arith.constant 0 : index
    %c0_79 = arith.constant 0 : index
    %101 = vector.load %arg11[%c0_78, %c0_79] : memref<8x1xf32, #tpu.memory_space<vmem>>, vector<8x1xf32>
    %102 = arith.mulf %7, %93 : vector<8x16xf32>
    %cst_80 = arith.constant dense<0.000000e+00> : vector<8xf32>
    %103 = vector.multi_reduction <add>, %102, %cst_80 [1] : vector<8x16xf32> to vector<8xf32>
    %104 = vector.shape_cast %103 : vector<8xf32> to vector<8x1xf32>
    %105 = arith.addf %101, %104 : vector<8x1xf32>
    %c0_81 = arith.constant 0 : index
    %c0_82 = arith.constant 0 : index
    %106 = vector.load %arg11[%c0_81, %c0_82] : memref<8x1xf32, #tpu.memory_space<vmem>>, vector<8x1xf32>
    tpu.vector_store %arg11[%c0_81, %c0_82], %105 {strides = array<i32>} : memref<8x1xf32, #tpu.memory_space<vmem>>, vector<8x1xf32>,
    %c2_i32 = arith.constant 2 : i32
    %107 = arith.cmpi eq, %arg0, %c2_i32 : i32
    %108 = arith.extui %107 : i1 to i32
    %c0_i32_83 = arith.constant 0 : i32
    %109 = arith.cmpi ne, %108, %c0_i32_83 : i32
    scf.if %109 {
      %c0_84 = arith.constant 0 : index
      %c0_85 = arith.constant 0 : index
      %110 = vector.load %arg10[%c0_84, %c0_85] : memref<8x16xf32, #tpu.memory_space<vmem>>, vector<8x16xf32>
      %c0_86 = arith.constant 0 : index
      %c0_87 = arith.constant 0 : index
      %111 = vector.load %arg8[%c0_86, %c0_87] : memref<8x16xf32, #tpu.memory_space<vmem>>, vector<8x16xf32>
      tpu.vector_store %arg8[%c0_86, %c0_87], %110 {strides = array<i32>} : memref<8x16xf32, #tpu.memory_space<vmem>>, vector<8x16xf32>,
      %c0_88 = arith.constant 0 : index
      %c0_89 = arith.constant 0 : index
      %112 = vector.load %arg11[%c0_88, %c0_89] : memref<8x1xf32, #tpu.memory_space<vmem>>, vector<8x1xf32>
      %c0_90 = arith.constant 0 : index
      %c0_91 = arith.constant 0 : index
      %113 = vector.load %arg9[%c0_90, %c0_91] : memref<8x1xf32, #tpu.memory_space<vmem>>, vector<8x1xf32>
      tpu.vector_store %arg9[%c0_90, %c0_91], %112 {strides = array<i32>} : memref<8x1xf32, #tpu.memory_space<vmem>>, vector<8x1xf32>,
    } else {
    }
    return
  }
  func.func @transform_0(%arg0: i32) -> (i32, i32) {
    %c0_i32 = arith.constant 0 : i32
    %c0_i32_0 = arith.constant 0 : i32
    %c0_i32_1 = arith.constant 0 : i32
    return %c0_i32, %c0_i32_0 : i32, i32
  }
  func.func @transform_1(%arg0: i32) -> (i32, i32, i32) {
    %c0_i32 = arith.constant 0 : i32
    %c0_i32_0 = arith.constant 0 : i32
    %c0_i32_1 = arith.constant 0 : i32
    return %arg0, %c0_i32, %c0_i32_0 : i32, i32, i32
  }
  func.func @transform_2(%arg0: i32) -> (i32, i32, i32) {
    %c0_i32 = arith.constant 0 : i32
    %c0_i32_0 = arith.constant 0 : i32
    %c0_i32_1 = arith.constant 0 : i32
    return %arg0, %c0_i32, %c0_i32_0 : i32, i32, i32
  }
  func.func @transform_3(%arg0: i32) -> (i32, i32, i32, i32) {
    %c0_i32 = arith.constant 0 : i32
    %c0_i32_0 = arith.constant 0 : i32
    %c0_i32_1 = arith.constant 0 : i32
    %c0_i32_2 = arith.constant 0 : i32
    return %arg0, %c0_i32, %c0_i32_0, %c0_i32_1 : i32, i32, i32, i32
  }
  func.func @transform_4(%arg0: i32) -> (i32, i32, i32, i32) {
    %c0_i32 = arith.constant 0 : i32
    %c0_i32_0 = arith.constant 0 : i32
    %c0_i32_1 = arith.constant 0 : i32
    %c0_i32_2 = arith.constant 0 : i32
    return %arg0, %c0_i32, %c0_i32_0, %c0_i32_1 : i32, i32, i32, i32
  }
  func.func @transform_5(%arg0: i32) -> (i32, i32, i32, i32) {
    %c0_i32 = arith.constant 0 : i32
    %c0_i32_0 = arith.constant 0 : i32
    %c0_i32_1 = arith.constant 0 : i32
    %c0_i32_2 = arith.constant 0 : i32
    return %arg0, %c0_i32, %c0_i32_0, %c0_i32_1 : i32, i32, i32, i32
  }
  func.func @transform_6(%arg0: i32) -> (i32, i32, i32, i32) {
    %c0_i32 = arith.constant 0 : i32
    %c0_i32_0 = arith.constant 0 : i32
    %c0_i32_1 = arith.constant 0 : i32
    %c0_i32_2 = arith.constant 0 : i32
    return %arg0, %c0_i32, %c0_i32_0, %c0_i32_1 : i32, i32, i32, i32
  }
  func.func @transform_7(%arg0: i32) -> (i32, i32) {
    %c0_i32 = arith.constant 0 : i32
    %c0_i32_0 = arith.constant 0 : i32
    %c0_i32_1 = arith.constant 0 : i32
    return %c0_i32, %c0_i32_0 : i32, i32
  }
  func.func @transform_8(%arg0: i32) -> (i32, i32) {
    %c0_i32 = arith.constant 0 : i32
    %c0_i32_0 = arith.constant 0 : i32
    %c0_i32_1 = arith.constant 0 : i32
    return %c0_i32, %c0_i32_0 : i32, i32
  }
}

</mosaic_0001>

<llo_original>
// kernel: tpu_custom_call.1
$region0: #{tpu_custom_call.1}
  #allocation0 [shape = 'u32[]', space=smem, size = 0x4, offset = 0x4, fixed_abs, tag = 'smem constant byte address 0x4 - core index']
  #allocation1 [shape = 'u32[144,128]{1,0:T(1,128)}', space=vmem, size = 0x12000, scoped, tag = 'internal scratch']
  #allocation2 [shape = 'f32[8,16]{1,0:T(8,128)}', space=vmem, size = 0x1000, scoped, tag = 'scratch operand']
  #allocation3 [shape = 'f32[8,1]{1,0:T(8,128)}', space=vmem, size = 0x1000, scoped, tag = 'scratch operand']
  %s0 = inlined_call_operand.vmem [shape: f32[8,16], index: 0, kind: input, shape index: {}]
  %s1 = inlined_call_operand.vmem [shape: f32[3,8,16], index: 1, kind: input, shape index: {}]
  %s2 = inlined_call_operand.vmem [shape: f32[3,16,64], index: 2, kind: input, shape index: {}]
  %s3 = inlined_call_operand.hbm [shape: f32[3,4,64,64], index: 3, kind: input, shape index: {}]
  %s4 = inlined_call_operand.vmem [shape: f32[3,5,1,64], index: 4, kind: input, shape index: {}]
  %s5 = inlined_call_operand.vmem [shape: f32[3,2,64,16], index: 5, kind: input, shape index: {}]
  %s6 = inlined_call_operand.vmem [shape: f32[3,2,1,16], index: 6, kind: input, shape index: {}]
  %s7 = inlined_call_operand.hbm [shape: f32[8,16], index: 7, kind: output, shape index: {0}]
  %s8 = inlined_call_operand.vmem [shape: f32[8,1], index: 8, kind: output, shape index: {1}]
  %9 = xla_tuple %s7, %s8
  %s10 = sld [smem:[#allocation0]]
  $region81: #{tpu_custom_call.1} parent=0
    _
  %s12 = ssub.s32 1, %s10
  %s13 = scalar_select 0, %s12, %s10
  $region1: #{tpu_custom_call.1} parent=0
    #allocation4 [shape = 'u8[262144]{0}', space=vmem, size = 0x40000, scoped, tag = 'input window, operand 3']
    #allocation5 [shape = 's32[2]{0}', space=sflag, size = 0x8, scoped, tag = 'scoped memory for tpu_custom_call.1']
    #allocation6 [shape = 's32[2]{0}', space=sflag, size = 0x8, scoped, tag = 'scoped memory for tpu_custom_call.1']
    #allocation7 [shape = 'u8[4096]{0}', space=vmem, size = 0x1000, scoped, tag = 'output window, operand 0, single buffered']
    %14 = vsyncpa [#allocation5], 0
    %s15 = scalar_lea.sflag [#allocation5], 1
    %16 = vsyncpa %s15, 0
    %17 = vsyncpa [#allocation6], 0
    loop: start=0, step=1, limit=5
    $region2: #{tpu_custom_call.1} parent=1 // loop_pre_header
      _
    $region3: #{tpu_custom_call.1} parent=1 // loop_header
      %s19 = sphi 0, %s23
      %p20 = scmp.ge.s32.totalorder %s19, 5
      %s27 = sphi 0, %s27
      %s29 = sphi 0, %s27
      %s30 = sphi 0, %s29
      %s44 = sphi 0, %s30
      %s50 = sphi 0, %s52
      %s53 = sphi 0, %s50
      %s54 = sphi 0, %s53
      %s70 = sphi 0, %s54
      %s76 = sphi 0, %s78
      %s79 = sphi 0, %s76
      %s80 = sphi 0, %s79
      %s96 = sphi 0, %s80
      %s102 = sphi 0, %s104
      %s105 = sphi 0, %s102
      %s106 = sphi 0, %s105
      %s122 = sphi 0, %s106
      %s128 = sphi 0, %s130
      %s131 = sphi 0, %s128
      %s132 = sphi 0, %s131
      %s148 = sphi 0, %s132
      %s154 = sphi 0, %s156
      %s157 = sphi 0, %s154
      %s158 = sphi 0, %s157
      %s174 = sphi 0, %s158
      %s180 = sphi 0, %s182
      %s183 = sphi 0, %s180
      %s184 = sphi 0, %s183
      %s200 = sphi 0, %s184
      %s204 = sphi 0, %s204
      %s206 = sphi 0, %s204
      %s207 = sphi 0, %s206
      %s221 = sphi 0, %s207
      %s225 = sphi 0, %s225
      %s227 = sphi 0, %s225
      %s228 = sphi 0, %s227
      %s242 = sphi 0, %s228
    $region4: #{tpu_custom_call.1} parent=1 // loop_header_branch
      %22 = sbr.rel (%p20) target = $region8
    $region5: #{tpu_custom_call.1} parent=1 // loop_body
      %s24 = ssub.s32 %s19, 1
      %s25 = ssub.s32 %s19, 2
      %s26 = sadd.s32 %s19, 1
      %s28 = sadd.s32 %s27, 1
      %p31 = scmp.eq.s32.totalorder %s19, 2
      %p32 = scmp.ne.s32.totalorder %s27, %s29
      %p33 = scmp.eq.s32.totalorder %s19, 0
      %p34 = por %p32, %p33
      %p35 = scmp.ne.s32.totalorder %s27, %s29
      %p36 = scmp.eq.s32.totalorder %s24, 2
      %p37 = por %p35, %p36
      %p38 = scmp.ne.s32.totalorder %s29, %s30
      %p39 = scmp.eq.s32.totalorder %s24, 0
      %p40 = por %p38, %p39
      %p41 = scmp.ne.s32.totalorder %s29, %s30
      %p42 = scmp.eq.s32.totalorder %s25, 2
      %p43 = por %p41, %p42
      %p45 = scmp.ne.s32.totalorder %s30, %s44
      %p46 = scmp.eq.s32.totalorder %s25, 0
      %p47 = por %p45, %p46
      %s48 = ssub.s32 %s19, %s26
      %p49 = scmp.eq.s32.totalorder %s48, 0
      %s51 = sadd.s32 %s50, 1
      %s52 = scalar_select %p49, %s50, %s51
      %p55 = pneg %p49
      %p56 = scmp.eq.s32.totalorder %s19, 2
      %p57 = por %p55, %p56
      %p58 = scmp.ne.s32.totalorder %s50, %s53
      %p59 = scmp.eq.s32.totalorder %s19, 0
      %p60 = por %p58, %p59
      %p61 = scmp.ne.s32.totalorder %s50, %s53
      %p62 = scmp.eq.s32.totalorder %s24, 2
      %p63 = por %p61, %p62
      %p64 = scmp.ne.s32.totalorder %s53, %s54
      %p65 = scmp.eq.s32.totalorder %s24, 0
      %p66 = por %p64, %p65
      %p67 = scmp.ne.s32.totalorder %s53, %s54
      %p68 = scmp.eq.s32.totalorder %s25, 2
      %p69 = por %p67, %p68
      %p71 = scmp.ne.s32.totalorder %s54, %s70
      %p72 = scmp.eq.s32.totalorder %s25, 0
      %p73 = por %p71, %p72
      %s74 = ssub.s32 %s19, %s26
      %p75 = scmp.eq.s32.totalorder %s74, 0
      %s77 = sadd.s32 %s76, 1
      %s78 = scalar_select %p75, %s76, %s77
      %p81 = pneg %p75
      %p82 = scmp.eq.s32.totalorder %s19, 2
      %p83 = por %p81, %p82
      %p84 = scmp.ne.s32.totalorder %s76, %s79
      %p85 = scmp.eq.s32.totalorder %s19, 0
      %p86 = por %p84, %p85
      %p87 = scmp.ne.s32.totalorder %s76, %s79
      %p88 = scmp.eq.s32.totalorder %s24, 2
      %p89 = por %p87, %p88
      %p90 = scmp.ne.s32.totalorder %s79, %s80
      %p91 = scmp.eq.s32.totalorder %s24, 0
      %p92 = por %p90, %p91
      %p93 = scmp.ne.s32.totalorder %s79, %s80
      %p94 = scmp.eq.s32.totalorder %s25, 2
      %p95 = por %p93, %p94
      %p97 = scmp.ne.s32.totalorder %s80, %s96
      %p98 = scmp.eq.s32.totalorder %s25, 0
      %p99 = por %p97, %p98
      %s100 = ssub.s32 %s19, %s26
      %p101 = scmp.eq.s32.totalorder %s100, 0
      %s103 = sadd.s32 %s102, 1
      %s104 = scalar_select %p101, %s102, %s103
      %p107 = pneg %p101
      %p108 = scmp.eq.s32.totalorder %s19, 2
      %p109 = por %p107, %p108
      %p110 = scmp.ne.s32.totalorder %s102, %s105
      %p111 = scmp.eq.s32.totalorder %s19, 0
      %p112 = por %p110, %p111
      %p113 = scmp.ne.s32.totalorder %s102, %s105
      %p114 = scmp.eq.s32.totalorder %s24, 2
      %p115 = por %p113, %p114
      %p116 = scmp.ne.s32.totalorder %s105, %s106
      %p117 = scmp.eq.s32.totalorder %s24, 0
      %p118 = por %p116, %p117
      %p119 = scmp.ne.s32.totalorder %s105, %s106
      %p120 = scmp.eq.s32.totalorder %s25, 2
      %p121 = por %p119, %p120
      %p123 = scmp.ne.s32.totalorder %s106, %s122
      %p124 = scmp.eq.s32.totalorder %s25, 0
      %p125 = por %p123, %p124
      %s126 = ssub.s32 %s19, %s26
      %p127 = scmp.eq.s32.totalorder %s126, 0
      %s129 = sadd.s32 %s128, 1
      %s130 = scalar_select %p127, %s128, %s129
      %p133 = pneg %p127
      %p134 = scmp.eq.s32.totalorder %s19, 2
      %p135 = por %p133, %p134
      %p136 = scmp.ne.s32.totalorder %s128, %s131
      %p137 = scmp.eq.s32.totalorder %s19, 0
      %p138 = por %p136, %p137
      %p139 = scmp.ne.s32.totalorder %s128, %s131
      %p140 = scmp.eq.s32.totalorder %s24, 2
      %p141 = por %p139, %p140
      %p142 = scmp.ne.s32.totalorder %s131, %s132
      %p143 = scmp.eq.s32.totalorder %s24, 0
      %p144 = por %p142, %p143
      %p145 = scmp.ne.s32.totalorder %s131, %s132
      %p146 = scmp.eq.s32.totalorder %s25, 2
      %p147 = por %p145, %p146
      %p149 = scmp.ne.s32.totalorder %s132, %s148
      %p150 = scmp.eq.s32.totalorder %s25, 0
      %p151 = por %p149, %p150
      %s152 = ssub.s32 %s19, %s26
      %p153 = scmp.eq.s32.totalorder %s152, 0
      %s155 = sadd.s32 %s154, 1
      %s156 = scalar_select %p153, %s154, %s155
      %p159 = pneg %p153
      %p160 = scmp.eq.s32.totalorder %s19, 2
      %p161 = por %p159, %p160
      %p162 = scmp.ne.s32.totalorder %s154, %s157
      %p163 = scmp.eq.s32.totalorder %s19, 0
      %p164 = por %p162, %p163
      %p165 = scmp.ne.s32.totalorder %s154, %s157
      %p166 = scmp.eq.s32.totalorder %s24, 2
      %p167 = por %p165, %p166
      %p168 = scmp.ne.s32.totalorder %s157, %s158
      %p169 = scmp.eq.s32.totalorder %s24, 0
      %p170 = por %p168, %p169
      %p171 = scmp.ne.s32.totalorder %s157, %s158
      %p172 = scmp.eq.s32.totalorder %s25, 2
      %p173 = por %p171, %p172
      %p175 = scmp.ne.s32.totalorder %s158, %s174
      %p176 = scmp.eq.s32.totalorder %s25, 0
      %p177 = por %p175, %p176
      %s178 = ssub.s32 %s19, %s26
      %p179 = scmp.eq.s32.totalorder %s178, 0
      %s181 = sadd.s32 %s180, 1
      %s182 = scalar_select %p179, %s180, %s181
      %p185 = pneg %p179
      %p186 = scmp.eq.s32.totalorder %s19, 2
      %p187 = por %p185, %p186
      %p188 = scmp.ne.s32.totalorder %s180, %s183
      %p189 = scmp.eq.s32.totalorder %s19, 0
      %p190 = por %p188, %p189
      %p191 = scmp.ne.s32.totalorder %s180, %s183
      %p192 = scmp.eq.s32.totalorder %s24, 2
      %p193 = por %p191, %p192
      %p194 = scmp.ne.s32.totalorder %s183, %s184
      %p195 = scmp.eq.s32.totalorder %s24, 0
      %p196 = por %p194, %p195
      %p197 = scmp.ne.s32.totalorder %s183, %s184
      %p198 = scmp.eq.s32.totalorder %s25, 2
      %p199 = por %p197, %p198
      %p201 = scmp.ne.s32.totalorder %s184, %s200
      %p202 = scmp.eq.s32.totalorder %s25, 0
      %p203 = por %p201, %p202
      %s205 = sadd.s32 %s204, 1
      %p208 = scmp.eq.s32.totalorder %s19, 2
      %p209 = scmp.ne.s32.totalorder %s204, %s206
      %p210 = scmp.eq.s32.totalorder %s19, 0
      %p211 = por %p209, %p210
      %p212 = scmp.ne.s32.totalorder %s204, %s206
      %p213 = scmp.eq.s32.totalorder %s24, 2
      %p214 = por %p212, %p213
      %p215 = scmp.ne.s32.totalorder %s206, %s207
      %p216 = scmp.eq.s32.totalorder %s24, 0
      %p217 = por %p215, %p216
      %p218 = scmp.ne.s32.totalorder %s206, %s207
      %p219 = scmp.eq.s32.totalorder %s25, 2
      %p220 = por %p218, %p219
      %p222 = scmp.ne.s32.totalorder %s207, %s221
      %p223 = scmp.eq.s32.totalorder %s25, 0
      %p224 = por %p222, %p223
      %s226 = sadd.s32 %s225, 1
      %p229 = scmp.eq.s32.totalorder %s19, 2
      %p230 = scmp.ne.s32.totalorder %s225, %s227
      %p231 = scmp.eq.s32.totalorder %s19, 0
      %p232 = por %p230, %p231
      %p233 = scmp.ne.s32.totalorder %s225, %s227
      %p234 = scmp.eq.s32.totalorder %s24, 2
      %p235 = por %p233, %p234
      %p236 = scmp.ne.s32.totalorder %s227, %s228
      %p237 = scmp.eq.s32.totalorder %s24, 0
      %p238 = por %p236, %p237
      %p239 = scmp.ne.s32.totalorder %s227, %s228
      %p240 = scmp.eq.s32.totalorder %s25, 2
      %p241 = por %p239, %p240
      %p243 = scmp.ne.s32.totalorder %s228, %s242
      %p244 = scmp.eq.s32.totalorder %s25, 0
      %p245 = por %p243, %p244
      %p246 = scmp.le.s32.totalorder 1, %s19
      %p247 = scmp.lt.s32.totalorder %s19, 4
      %p248 = pnand %p246, %p247
      %p249 = pneg %p248
      // Predicated region
      $region9: #{tpu_custom_call.1} parent=5 // pred_check
        _
      $region10: #{tpu_custom_call.1} parent=5 // pred_check_branch
        %251 = sbr.rel (%p248) target = $region12
      $region11: #{tpu_custom_call.1} parent=5 // pred_region
        %s252 = ssub.s32 %s19, 1
        // Predicated region
        $region13: #{tpu_custom_call.1} parent=11 // pred_check
          %p253 = pneg %p40
        $region14: #{tpu_custom_call.1} parent=11 // pred_check_branch
          %255 = sbr.rel (%p253) target = $region16
        $region15: #{tpu_custom_call.1} parent=11 // pred_region
          _
        $region16: #{tpu_custom_call.1} parent=11 // pred_fallthru
          _
      $region12: #{tpu_custom_call.1} parent=5 // pred_fallthru
        _
      %p256 = scmp.lt.s32.totalorder %s19, 3
      // Predicated region
      $region17: #{tpu_custom_call.1} parent=5 // pred_check
        %p257 = pneg %p256
      $region18: #{tpu_custom_call.1} parent=5 // pred_check_branch
        %259 = sbr.rel (%p257) target = $region20
      $region19: #{tpu_custom_call.1} parent=5 // pred_region
        // Predicated region
        $region21: #{tpu_custom_call.1} parent=19 // pred_check
          %p260 = pneg %p60
        $region22: #{tpu_custom_call.1} parent=19 // pred_check_branch
          %262 = sbr.rel (%p260) target = $region24
        $region23: #{tpu_custom_call.1} parent=19 // pred_region
          %p263 = scmp.lt.s32.totalorder %s19, 2
          %s264 = scalar_select %p263, %s19, 2
          %s265 = smul.addr %s264, 8
          %s266 = scalar_lea.vmem %s1, %s265
        $region24: #{tpu_custom_call.1} parent=19 // pred_fallthru
          _
        // Predicated region
        $region25: #{tpu_custom_call.1} parent=19 // pred_check
          %p267 = pneg %p86
        $region26: #{tpu_custom_call.1} parent=19 // pred_check_branch
          %269 = sbr.rel (%p267) target = $region28
        $region27: #{tpu_custom_call.1} parent=19 // pred_region
          %p270 = scmp.lt.s32.totalorder %s19, 2
          %s271 = scalar_select %p270, %s19, 2
          %s272 = smul.addr %s271, 2
          %s273 = smul.addr %s272, 8
          %s274 = scalar_lea.vmem %s2, %s273
        $region28: #{tpu_custom_call.1} parent=19 // pred_fallthru
          _
        // Predicated region
        $region29: #{tpu_custom_call.1} parent=19 // pred_check
          %p275 = pneg %p112
        $region30: #{tpu_custom_call.1} parent=19 // pred_check_branch
          %277 = sbr.rel (%p275) target = $region32
        $region31: #{tpu_custom_call.1} parent=19 // pred_region
          %s278 = sand.u32 %s102, 1
          %s279 = scalar_lea.sflag [#allocation5], %s278
          %s280 = sand.u32 %s102, 1
          %s281 = smul.addr %s280, 256
          %s282 = scalar_lea.vmem [#allocation4], %s281
          %s284 = ssub.s32 4096, 4096
          %285 = vsyncadd %s279, %s284
          %s286 = smul.addr %s19, 32
          %s287 = smul.addr %s286, 128
          %s288 = scalar_lea.hbm %s3, %s287
          %s289 = sshll.u32 %s282, 4
          %s290 = int_to_ptr.vmem [resolvable:$true] %s289
          %295 = dma.hbm_to_vmem [thread:$0]  %s288, 4096, %s290, %s279, 128, 128, 8
        $region32: #{tpu_custom_call.1} parent=19 // pred_fallthru
          _
        // Predicated region
        $region33: #{tpu_custom_call.1} parent=19 // pred_check
          %p296 = pneg %p138
        $region34: #{tpu_custom_call.1} parent=19 // pred_check_branch
          %298 = sbr.rel (%p296) target = $region36
        $region35: #{tpu_custom_call.1} parent=19 // pred_region
          %p299 = scmp.lt.s32.totalorder %s19, 2
          %s300 = scalar_select %p299, %s19, 2
          %s301 = smul.addr %s300, 5
          %s302 = scalar_lea.vmem %s4, %s301
        $region36: #{tpu_custom_call.1} parent=19 // pred_fallthru
          _
        // Predicated region
        $region37: #{tpu_custom_call.1} parent=19 // pred_check
          %p303 = pneg %p164
        $region38: #{tpu_custom_call.1} parent=19 // pred_check_branch
          %305 = sbr.rel (%p303) target = $region40
        $region39: #{tpu_custom_call.1} parent=19 // pred_region
          %p306 = scmp.lt.s32.totalorder %s19, 2
          %s307 = scalar_select %p306, %s19, 2
          %s308 = smul.addr %s307, 16
          %s309 = smul.addr %s308, 8
          %s310 = scalar_lea.vmem %s5, %s309
        $region40: #{tpu_custom_call.1} parent=19 // pred_fallthru
          _
        // Predicated region
        $region41: #{tpu_custom_call.1} parent=19 // pred_check
          %p311 = pneg %p190
        $region42: #{tpu_custom_call.1} parent=19 // pred_check_branch
          %313 = sbr.rel (%p311) target = $region44
        $region43: #{tpu_custom_call.1} parent=19 // pred_region
          %p314 = scmp.lt.s32.totalorder %s19, 2
          %s315 = scalar_select %p314, %s19, 2
          %s316 = smul.addr %s315, 2
          %s317 = scalar_lea.vmem %s6, %s316
        $region44: #{tpu_custom_call.1} parent=19 // pred_fallthru
          _
      $region20: #{tpu_custom_call.1} parent=5 // pred_fallthru
        _
      %p318 = scmp.le.s32.totalorder 1, %s19
      %p319 = scmp.lt.s32.totalorder %s19, 4
      %p320 = pnand %p318, %p319
      %p321 = pneg %p320
      // Predicated region
      $region45: #{tpu_custom_call.1} parent=5 // pred_check
        _
      $region46: #{tpu_custom_call.1} parent=5 // pred_check_branch
        %323 = sbr.rel (%p320) target = $region48
      $region47: #{tpu_custom_call.1} parent=5 // pred_region
        %s324 = ssub.s32 %s19, 1
        %s325 = sand.u32 %s105, 1
        %s326 = scalar_lea.sflag [#allocation5], %s325
        %s327 = sand.u32 %s105, 1
        %s328 = smul.addr %s327, 256
        %s329 = scalar_lea.vmem [#allocation4], %s328
        // Predicated region
        $region49: #{tpu_custom_call.1} parent=47 // pred_check
          %p330 = pneg %p118
        $region50: #{tpu_custom_call.1} parent=47 // pred_check_branch
          %332 = sbr.rel (%p330) target = $region52
        $region51: #{tpu_custom_call.1} parent=47 // pred_region
          %333 = dma.done %s326, 4096
        $region52: #{tpu_custom_call.1} parent=47 // pred_fallthru
          _
        %p334 = pneg %p40
        %p335 = pneg %p37
        %p336 = scmp.lt.s32.totalorder %s24, 2
        %s337 = scalar_select %p336, %s24, 2
        %s338 = smul.addr %s337, 8
        %s339 = scalar_lea.vmem %s1, %s338
        %p340 = pneg %p66
        %p341 = pneg %p63
        %p342 = scmp.lt.s32.totalorder %s24, 2
        %s343 = scalar_select %p342, %s24, 2
        %s344 = smul.addr %s343, 2
        %s345 = smul.addr %s344, 8
        %s346 = scalar_lea.vmem %s2, %s345
        %p347 = pneg %p92
        %p348 = pneg %p89
        %s349 = sand.u32 %s105, 1
        %s350 = scalar_lea.sflag [#allocation5], %s349
        %s351 = sand.u32 %s105, 1
        %s352 = smul.addr %s351, 256
        %s353 = scalar_lea.vmem [#allocation4], %s352
        %p354 = pneg %p118
        %p355 = pneg %p115
        %p356 = scmp.lt.s32.totalorder %s24, 2
        %s357 = scalar_select %p356, %s24, 2
        %s358 = smul.addr %s357, 5
        %s359 = scalar_lea.vmem %s4, %s358
        %p360 = pneg %p144
        %p361 = pneg %p141
        %p362 = scmp.lt.s32.totalorder %s24, 2
        %s363 = scalar_select %p362, %s24, 2
        %s364 = smul.addr %s363, 16
        %s365 = smul.addr %s364, 8
        %s366 = scalar_lea.vmem %s5, %s365
        %p367 = pneg %p170
        %p368 = pneg %p167
        %p369 = scmp.lt.s32.totalorder %s24, 2
        %s370 = scalar_select %p369, %s24, 2
        %s371 = smul.addr %s370, 2
        %s372 = scalar_lea.vmem %s6, %s371
        %p373 = pneg %p196
        %p374 = pneg %p193
        %p375 = pneg %p217
        %p376 = pneg %p214
        %p377 = pneg %p238
        %p378 = pneg %p235
        %p379 = scmp.lt.s32.totalorder %s24, 2
        %s380 = scalar_select %p379, %s24, 2
        %s381 = smul.addr %s380, 8
        %s382 = scalar_lea.vmem %s1, %s381
        %p383 = scmp.lt.s32.totalorder %s24, 2
        %s384 = scalar_select %p383, %s24, 2
        %s385 = smul.addr %s384, 2
        %s386 = smul.addr %s385, 8
        %s387 = scalar_lea.vmem %s2, %s386
        %p388 = scmp.lt.s32.totalorder %s24, 2
        %s389 = scalar_select %p388, %s24, 2
        %s390 = smul.addr %s389, 5
        %s391 = scalar_lea.vmem %s4, %s390
        %p392 = scmp.lt.s32.totalorder %s24, 2
        %s393 = scalar_select %p392, %s24, 2
        %s394 = smul.addr %s393, 16
        %s395 = smul.addr %s394, 8
        %s396 = scalar_lea.vmem %s5, %s395
        %p397 = scmp.lt.s32.totalorder %s24, 2
        %s398 = scalar_select %p397, %s24, 2
        %s399 = smul.addr %s398, 2
        %s400 = scalar_lea.vmem %s6, %s399
        %p401 = scmp.eq.s32.totalorder %s24, 0
        // Predicated region
        $region53: #{tpu_custom_call.1} parent=47 // pred_check
          %p402 = pneg %p401
        $region54: #{tpu_custom_call.1} parent=47 // pred_check_branch
          %404 = sbr.rel (%p402) target = $region56
        $region55: #{tpu_custom_call.1} parent=47 // pred_region
          %v405 = vld [vmem:[%s0] sm:$0xff]
          %vm406 = vcmask 130048
          %407 = vst.msk [vmem:[#allocation2] sm:$0xff] %vm406, %v405
          %vm408 = vcmask 7168
          %409 = vst.msk [vmem:[#allocation3] sm:$0xff] %vm408, 0.0
        $region56: #{tpu_custom_call.1} parent=47 // pred_fallthru
          _
        %v410 = vld [vmem:[#allocation2] sm:$0xff]
        %v411 = vld [vmem:[%s382] sm:$0xff]
        %v412 = vsub.f32 1.0, %v411
        %v413 = vmul.f32 %v412, %v410
        %v414 = vmul.f32 %v411, %v410
        %v415 = vld [vmem:[%s387] sm:$0xff]
        %v416 = vld [vmem:[%s387 + $0x8] sm:$0xff]
        %v417 = vld [vmem:[%s391] sm:$0x1]
        %v419 = vlaneseq
        %v420 = vshrl.u32 %v419, 7
        %v421 = vsub.s32 0, %v420
        %v422 = vrot.slane %v417, %v421
        %vm424 = vcmask 130048
        %v426 = vsel %vm424, %v414, 0
        %428 = vmatprep.subr.mxu0 0.0
        %429 = vmatpush1.msra.mxu0 %v415
        %430 = vmatprep.subr.mxu0 0.0
        %431 = vmatpush1.msra.mxu0 %v416
        %432 = vmatprep.subr.mxu0 0.0
        %433 = vmatpush1.msra.mxu0 0.0
        %434 = vmatprep.subr.mxu0 0.0
        %435 = vmatpush1.msra.mxu0 0.0
        %436 = vmatprep.subr.mxu0 0.0
        %437 = vmatpush1.msra.mxu0 0.0
        %438 = vmatprep.subr.mxu0 0.0
        %439 = vmatpush1.msra.mxu0 0.0
        %440 = vmatprep.subr.mxu0 0.0
        %441 = vmatpush1.msra.mxu0 0.0
        %442 = vmatprep.subr.mxu0 0.0
        %443 = vmatpush1.msra.mxu0 0.0
        %444 = vmatprep.subr.mxu0 0.0
        %445 = vmatpush1.msra.mxu0 0.0
        %446 = vmatprep.subr.mxu0 0.0
        %447 = vmatpush1.msra.mxu0 0.0
        %448 = vmatprep.subr.mxu0 0.0
        %449 = vmatpush1.msra.mxu0 0.0
        %450 = vmatprep.subr.mxu0 0.0
        %451 = vmatpush1.msra.mxu0 0.0
        %452 = vmatprep.subr.mxu0 0.0
        %453 = vmatpush1.msra.mxu0 0.0
        %454 = vmatprep.subr.mxu0 0.0
        %455 = vmatpush1.msra.mxu0 0.0
        %456 = vmatprep.subr.mxu0 0.0
        %457 = vmatpush1.msra.mxu0 0.0
        %458 = vmatprep.subr.mxu0 0.0
        %459 = vmatpush1.msra.mxu0 0.0
        %460 = vmatprep.subr.mxu0 0.0
        %461 = vmatpush1.msra.mxu0 0.0
        %462 = vmatprep.subr.mxu0 0.0
        %463 = vmatpush1.msra.mxu0 0.0
        %464 = vmatprep.subr.mxu0 0.0
        %465 = vmatpush1.msra.mxu0 0.0
        %466 = vmatprep.subr.mxu0 0.0
        %467 = vmatpush1.msra.mxu0 0.0
        %468 = vmatprep.subr.mxu0 0.0
        %469 = vmatpush1.msra.mxu0 0.0
        %470 = vmatprep.subr.mxu0 0.0
        %471 = vmatpush1.msra.mxu0 0.0
        %472 = vmatprep.subr.mxu0 0.0
        %473 = vmatpush1.msra.mxu0 0.0
        %474 = vmatprep.subr.mxu0 0.0
        %475 = vmatpush1.msra.mxu0 0.0
        %476 = vmatprep.subr.mxu0 0.0
        %477 = vmatpush1.msra.mxu0 0.0
        %478 = vmatprep.subr.mxu0 0.0
        %479 = vmatpush1.msra.mxu0 0.0
        %480 = vmatprep.subr.mxu0 0.0
        %481 = vmatpush1.msra.mxu0 0.0
        %482 = vmatprep.subr.mxu0 0.0
        %483 = vmatpush1.msra.mxu0 0.0
        %484 = vmatprep.subr.mxu0 0.0
        %485 = vmatpush1.msra.mxu0 0.0
        %486 = vmatprep.subr.mxu0 0.0
        %487 = vmatpush1.msra.mxu0 0.0
        %488 = vmatprep.subr.mxu0 0.0
        %489 = vmatpush1.msra.mxu0 0.0
        %490 = vmatprep.subr.mxu0 0.0
        %491 = vmatpush1.msra.mxu0 0.0
        %492 = vmatprep.mubr.f32.mxu0 0.0
        %493 = vmatmul.mubr.f32.gmra.mrb[0].mxu0 %v426
        %v494 = vpop.f32.mrb[0].mxu0
        %v495 = vadd.f32 %v422, %v494
        %v496 = vpop.f32.mrb[0].mxu0
        %497 = vdwg.mxu0
        %vm498 = vcmp.gt.f32.partialorder %v495, 0.0
        %v499 = vmul.f32 %v495, 0.1
        %v500 = vsel %vm498, %v495, %v499
        %v501 = vld [vmem:[%s329] sm:$0xff]
        %v502 = vld [vmem:[%s329 + $0x8] sm:$0xff]
        %v503 = vld [vmem:[%s329 + $0x10] sm:$0xff]
        %v504 = vld [vmem:[%s329 + $0x18] sm:$0xff]
        %v505 = vld [vmem:[%s329 + $0x20] sm:$0xff]
        %v506 = vld [vmem:[%s329 + $0x28] sm:$0xff]
        %v507 = vld [vmem:[%s329 + $0x30] sm:$0xff]
        %v508 = vld [vmem:[%s329 + $0x38] sm:$0xff]
        %s509 = scalar_lea.vmem %s391, 1
        %v510 = vld [vmem:[%s509] sm:$0x1]
        %v512 = vlaneseq
        %v513 = vshrl.u32 %v512, 7
        %v514 = vsub.s32 0, %v513
        %v515 = vrot.slane %v510, %v514
        %vm517 = vcmask 523264
        %v519 = vsel %vm517, %v500, 0
        %521 = vmatprep.subr.mxu0 0.0
        %522 = vmatpush1.msra.mxu0 %v501
        %523 = vmatprep.subr.mxu0 0.0
        %524 = vmatpush1.msra.mxu0 %v502
        %525 = vmatprep.subr.mxu0 0.0
        %526 = vmatpush1.msra.mxu0 %v503
        %527 = vmatprep.subr.mxu0 0.0
        %528 = vmatpush1.msra.mxu0 %v504
        %529 = vmatprep.subr.mxu0 0.0
        %530 = vmatpush1.msra.mxu0 %v505
        %531 = vmatprep.subr.mxu0 0.0
        %532 = vmatpush1.msra.mxu0 %v506
        %533 = vmatprep.subr.mxu0 0.0
        %534 = vmatpush1.msra.mxu0 %v507
        %535 = vmatprep.subr.mxu0 0.0
        %536 = vmatpush1.msra.mxu0 %v508
        %537 = vmatprep.subr.mxu0 0.0
        %538 = vmatpush1.msra.mxu0 0.0
        %539 = vmatprep.subr.mxu0 0.0
        %540 = vmatpush1.msra.mxu0 0.0
        %541 = vmatprep.subr.mxu0 0.0
        %542 = vmatpush1.msra.mxu0 0.0
        %543 = vmatprep.subr.mxu0 0.0
        %544 = vmatpush1.msra.mxu0 0.0
        %545 = vmatprep.subr.mxu0 0.0
        %546 = vmatpush1.msra.mxu0 0.0
        %547 = vmatprep.subr.mxu0 0.0
        %548 = vmatpush1.msra.mxu0 0.0
        %549 = vmatprep.subr.mxu0 0.0
        %550 = vmatpush1.msra.mxu0 0.0
        %551 = vmatprep.subr.mxu0 0.0
        %552 = vmatpush1.msra.mxu0 0.0
        %553 = vmatprep.subr.mxu0 0.0
        %554 = vmatpush1.msra.mxu0 0.0
        %555 = vmatprep.subr.mxu0 0.0
        %556 = vmatpush1.msra.mxu0 0.0
        %557 = vmatprep.subr.mxu0 0.0
        %558 = vmatpush1.msra.mxu0 0.0
        %559 = vmatprep.subr.mxu0 0.0
        %560 = vmatpush1.msra.mxu0 0.0
        %561 = vmatprep.subr.mxu0 0.0
        %562 = vmatpush1.msra.mxu0 0.0
        %563 = vmatprep.subr.mxu0 0.0
        %564 = vmatpush1.msra.mxu0 0.0
        %565 = vmatprep.subr.mxu0 0.0
        %566 = vmatpush1.msra.mxu0 0.0
        %567 = vmatprep.subr.mxu0 0.0
        %568 = vmatpush1.msra.mxu0 0.0
        %569 = vmatprep.subr.mxu0 0.0
        %570 = vmatpush1.msra.mxu0 0.0
        %571 = vmatprep.subr.mxu0 0.0
        %572 = vmatpush1.msra.mxu0 0.0
        %573 = vmatprep.subr.mxu0 0.0
        %574 = vmatpush1.msra.mxu0 0.0
        %575 = vmatprep.subr.mxu0 0.0
        %576 = vmatpush1.msra.mxu0 0.0
        %577 = vmatprep.subr.mxu0 0.0
        %578 = vmatpush1.msra.mxu0 0.0
        %579 = vmatprep.subr.mxu0 0.0
        %580 = vmatpush1.msra.mxu0 0.0
        %581 = vmatprep.subr.mxu0 0.0
        %582 = vmatpush1.msra.mxu0 0.0
        %583 = vmatprep.subr.mxu0 0.0
        %584 = vmatpush1.msra.mxu0 0.0
        %585 = vmatprep.mubr.f32.mxu0 0.0
        %586 = vmatmul.mubr.f32.gmra.mrb[0].mxu0 %v519
        %v587 = vpop.f32.mrb[0].mxu0
        %v588 = vadd.f32 %v515, %v587
        %v589 = vpop.f32.mrb[0].mxu0
        %590 = vdwg.mxu0
        %vm591 = vcmp.gt.f32.partialorder %v588, 0.0
        %v592 = vmul.f32 %v588, 0.1
        %v593 = vsel %vm591, %v588, %v592
        %s594 = scalar_lea.vmem %s329, 64 [#allocation4]
        %v595 = vld [vmem:[%s594] sm:$0xff]
        %v596 = vld [vmem:[%s594 + $0x8] sm:$0xff]
        %v597 = vld [vmem:[%s594 + $0x10] sm:$0xff]
        %v598 = vld [vmem:[%s594 + $0x18] sm:$0xff]
        %v599 = vld [vmem:[%s594 + $0x20] sm:$0xff]
        %v600 = vld [vmem:[%s594 + $0x28] sm:$0xff]
        %v601 = vld [vmem:[%s594 + $0x30] sm:$0xff]
        %v602 = vld [vmem:[%s594 + $0x38] sm:$0xff]
        %s603 = scalar_lea.vmem %s391, 2
        %v604 = vld [vmem:[%s603] sm:$0x1]
        %v606 = vlaneseq
        %v607 = vshrl.u32 %v606, 7
        %v608 = vsub.s32 0, %v607
        %v609 = vrot.slane %v604, %v608
        %v612 = vsel %vm517, %v593, 0
        %614 = vmatprep.subr.mxu0 0.0
        %615 = vmatpush1.msra.mxu0 %v595
        %616 = vmatprep.subr.mxu0 0.0
        %617 = vmatpush1.msra.mxu0 %v596
        %618 = vmatprep.subr.mxu0 0.0
        %619 = vmatpush1.msra.mxu0 %v597
        %620 = vmatprep.subr.mxu0 0.0
        %621 = vmatpush1.msra.mxu0 %v598
        %622 = vmatprep.subr.mxu0 0.0
        %623 = vmatpush1.msra.mxu0 %v599
        %624 = vmatprep.subr.mxu0 0.0
        %625 = vmatpush1.msra.mxu0 %v600
        %626 = vmatprep.subr.mxu0 0.0
        %627 = vmatpush1.msra.mxu0 %v601
        %628 = vmatprep.subr.mxu0 0.0
        %629 = vmatpush1.msra.mxu0 %v602
        %630 = vmatprep.subr.mxu0 0.0
        %631 = vmatpush1.msra.mxu0 0.0
        %632 = vmatprep.subr.mxu0 0.0
        %633 = vmatpush1.msra.mxu0 0.0
        %634 = vmatprep.subr.mxu0 0.0
        %635 = vmatpush1.msra.mxu0 0.0
        %636 = vmatprep.subr.mxu0 0.0
        %637 = vmatpush1.msra.mxu0 0.0
        %638 = vmatprep.subr.mxu0 0.0
        %639 = vmatpush1.msra.mxu0 0.0
        %640 = vmatprep.subr.mxu0 0.0
        %641 = vmatpush1.msra.mxu0 0.0
        %642 = vmatprep.subr.mxu0 0.0
        %643 = vmatpush1.msra.mxu0 0.0
        %644 = vmatprep.subr.mxu0 0.0
        %645 = vmatpush1.msra.mxu0 0.0
        %646 = vmatprep.subr.mxu0 0.0
        %647 = vmatpush1.msra.mxu0 0.0
        %648 = vmatprep.subr.mxu0 0.0
        %649 = vmatpush1.msra.mxu0 0.0
        %650 = vmatprep.subr.mxu0 0.0
        %651 = vmatpush1.msra.mxu0 0.0
        %652 = vmatprep.subr.mxu0 0.0
        %653 = vmatpush1.msra.mxu0 0.0
        %654 = vmatprep.subr.mxu0 0.0
        %655 = vmatpush1.msra.mxu0 0.0
        %656 = vmatprep.subr.mxu0 0.0
        %657 = vmatpush1.msra.mxu0 0.0
        %658 = vmatprep.subr.mxu0 0.0
        %659 = vmatpush1.msra.mxu0 0.0
        %660 = vmatprep.subr.mxu0 0.0
        %661 = vmatpush1.msra.mxu0 0.0
        %662 = vmatprep.subr.mxu0 0.0
        %663 = vmatpush1.msra.mxu0 0.0
        %664 = vmatprep.subr.mxu0 0.0
        %665 = vmatpush1.msra.mxu0 0.0
        %666 = vmatprep.subr.mxu0 0.0
        %667 = vmatpush1.msra.mxu0 0.0
        %668 = vmatprep.subr.mxu0 0.0
        %669 = vmatpush1.msra.mxu0 0.0
        %670 = vmatprep.subr.mxu0 0.0
        %671 = vmatpush1.msra.mxu0 0.0
        %672 = vmatprep.subr.mxu0 0.0
        %673 = vmatpush1.msra.mxu0 0.0
        %674 = vmatprep.subr.mxu0 0.0
        %675 = vmatpush1.msra.mxu0 0.0
        %676 = vmatprep.subr.mxu0 0.0
        %677 = vmatpush1.msra.mxu0 0.0
        %678 = vmatprep.mubr.f32.mxu0 0.0
        %679 = vmatmul.mubr.f32.gmra.mrb[0].mxu0 %v612
        %v680 = vpop.f32.mrb[0].mxu0
        %v681 = vadd.f32 %v609, %v680
        %v682 = vpop.f32.mrb[0].mxu0
        %683 = vdwg.mxu0
        %vm684 = vcmp.gt.f32.partialorder %v681, 0.0
        %v685 = vmul.f32 %v681, 0.1
        %v686 = vsel %vm684, %v681, %v685
        %s687 = scalar_lea.vmem %s329, 128 [#allocation4]
        %v688 = vld [vmem:[%s687] sm:$0xff]
        %v689 = vld [vmem:[%s687 + $0x8] sm:$0xff]
        %v690 = vld [vmem:[%s687 + $0x10] sm:$0xff]
        %v691 = vld [vmem:[%s687 + $0x18] sm:$0xff]
        %v692 = vld [vmem:[%s687 + $0x20] sm:$0xff]
        %v693 = vld [vmem:[%s687 + $0x28] sm:$0xff]
        %v694 = vld [vmem:[%s687 + $0x30] sm:$0xff]
        %v695 = vld [vmem:[%s687 + $0x38] sm:$0xff]
        %s696 = scalar_lea.vmem %s391, 3
        %v697 = vld [vmem:[%s696] sm:$0x1]
        %v699 = vlaneseq
        %v700 = vshrl.u32 %v699, 7
        %v701 = vsub.s32 0, %v700
        %v702 = vrot.slane %v697, %v701
        %v705 = vsel %vm517, %v686, 0
        %707 = vmatprep.subr.mxu0 0.0
        %708 = vmatpush1.msra.mxu0 %v688
        %709 = vmatprep.subr.mxu0 0.0
        %710 = vmatpush1.msra.mxu0 %v689
        %711 = vmatprep.subr.mxu0 0.0
        %712 = vmatpush1.msra.mxu0 %v690
        %713 = vmatprep.subr.mxu0 0.0
        %714 = vmatpush1.msra.mxu0 %v691
        %715 = vmatprep.subr.mxu0 0.0
        %716 = vmatpush1.msra.mxu0 %v692
        %717 = vmatprep.subr.mxu0 0.0
        %718 = vmatpush1.msra.mxu0 %v693
        %719 = vmatprep.subr.mxu0 0.0
        %720 = vmatpush1.msra.mxu0 %v694
        %721 = vmatprep.subr.mxu0 0.0
        %722 = vmatpush1.msra.mxu0 %v695
        %723 = vmatprep.subr.mxu0 0.0
        %724 = vmatpush1.msra.mxu0 0.0
        %725 = vmatprep.subr.mxu0 0.0
        %726 = vmatpush1.msra.mxu0 0.0
        %727 = vmatprep.subr.mxu0 0.0
        %728 = vmatpush1.msra.mxu0 0.0
        %729 = vmatprep.subr.mxu0 0.0
        %730 = vmatpush1.msra.mxu0 0.0
        %731 = vmatprep.subr.mxu0 0.0
        %732 = vmatpush1.msra.mxu0 0.0
        %733 = vmatprep.subr.mxu0 0.0
        %734 = vmatpush1.msra.mxu0 0.0
        %735 = vmatprep.subr.mxu0 0.0
        %736 = vmatpush1.msra.mxu0 0.0
        %737 = vmatprep.subr.mxu0 0.0
        %738 = vmatpush1.msra.mxu0 0.0
        %739 = vmatprep.subr.mxu0 0.0
        %740 = vmatpush1.msra.mxu0 0.0
        %741 = vmatprep.subr.mxu0 0.0
        %742 = vmatpush1.msra.mxu0 0.0
        %743 = vmatprep.subr.mxu0 0.0
        %744 = vmatpush1.msra.mxu0 0.0
        %745 = vmatprep.subr.mxu0 0.0
        %746 = vmatpush1.msra.mxu0 0.0
        %747 = vmatprep.subr.mxu0 0.0
        %748 = vmatpush1.msra.mxu0 0.0
        %749 = vmatprep.subr.mxu0 0.0
        %750 = vmatpush1.msra.mxu0 0.0
        %751 = vmatprep.subr.mxu0 0.0
        %752 = vmatpush1.msra.mxu0 0.0
        %753 = vmatprep.subr.mxu0 0.0
        %754 = vmatpush1.msra.mxu0 0.0
        %755 = vmatprep.subr.mxu0 0.0
        %756 = vmatpush1.msra.mxu0 0.0
        %757 = vmatprep.subr.mxu0 0.0
        %758 = vmatpush1.msra.mxu0 0.0
        %759 = vmatprep.subr.mxu0 0.0
        %760 = vmatpush1.msra.mxu0 0.0
        %761 = vmatprep.subr.mxu0 0.0
        %762 = vmatpush1.msra.mxu0 0.0
        %763 = vmatprep.subr.mxu0 0.0
        %764 = vmatpush1.msra.mxu0 0.0
        %765 = vmatprep.subr.mxu0 0.0
        %766 = vmatpush1.msra.mxu0 0.0
        %767 = vmatprep.subr.mxu0 0.0
        %768 = vmatpush1.msra.mxu0 0.0
        %769 = vmatprep.subr.mxu0 0.0
        %770 = vmatpush1.msra.mxu0 0.0
        %771 = vmatprep.mubr.f32.mxu0 0.0
        %772 = vmatmul.mubr.f32.gmra.mrb[0].mxu0 %v705
        %v773 = vpop.f32.mrb[0].mxu0
        %v774 = vadd.f32 %v702, %v773
        %v775 = vpop.f32.mrb[0].mxu0
        %776 = vdwg.mxu0
        %vm777 = vcmp.gt.f32.partialorder %v774, 0.0
        %v778 = vmul.f32 %v774, 0.1
        %v779 = vsel %vm777, %v774, %v778
        %s780 = scalar_lea.vmem %s329, 192 [#allocation4]
        %v781 = vld [vmem:[%s780] sm:$0xff]
        %v782 = vld [vmem:[%s780 + $0x8] sm:$0xff]
        %v783 = vld [vmem:[%s780 + $0x10] sm:$0xff]
        %v784 = vld [vmem:[%s780 + $0x18] sm:$0xff]
        %v785 = vld [vmem:[%s780 + $0x20] sm:$0xff]
        %v786 = vld [vmem:[%s780 + $0x28] sm:$0xff]
        %v787 = vld [vmem:[%s780 + $0x30] sm:$0xff]
        %v788 = vld [vmem:[%s780 + $0x38] sm:$0xff]
        %s789 = scalar_lea.vmem %s391, 4
        %v790 = vld [vmem:[%s789] sm:$0x1]
        %v792 = vlaneseq
        %v793 = vshrl.u32 %v792, 7
        %v794 = vsub.s32 0, %v793
        %v795 = vrot.slane %v790, %v794
        %v798 = vsel %vm517, %v779, 0
        %800 = vmatprep.subr.mxu0 0.0
        %801 = vmatpush1.msra.mxu0 %v781
        %802 = vmatprep.subr.mxu0 0.0
        %803 = vmatpush1.msra.mxu0 %v782
        %804 = vmatprep.subr.mxu0 0.0
        %805 = vmatpush1.msra.mxu0 %v783
        %806 = vmatprep.subr.mxu0 0.0
        %807 = vmatpush1.msra.mxu0 %v784
        %808 = vmatprep.subr.mxu0 0.0
        %809 = vmatpush1.msra.mxu0 %v785
        %810 = vmatprep.subr.mxu0 0.0
        %811 = vmatpush1.msra.mxu0 %v786
        %812 = vmatprep.subr.mxu0 0.0
        %813 = vmatpush1.msra.mxu0 %v787
        %814 = vmatprep.subr.mxu0 0.0
        %815 = vmatpush1.msra.mxu0 %v788
        %816 = vmatprep.subr.mxu0 0.0
        %817 = vmatpush1.msra.mxu0 0.0
        %818 = vmatprep.subr.mxu0 0.0
        %819 = vmatpush1.msra.mxu0 0.0
        %820 = vmatprep.subr.mxu0 0.0
        %821 = vmatpush1.msra.mxu0 0.0
        %822 = vmatprep.subr.mxu0 0.0
        %823 = vmatpush1.msra.mxu0 0.0
        %824 = vmatprep.subr.mxu0 0.0
        %825 = vmatpush1.msra.mxu0 0.0
        %826 = vmatprep.subr.mxu0 0.0
        %827 = vmatpush1.msra.mxu0 0.0
        %828 = vmatprep.subr.mxu0 0.0
        %829 = vmatpush1.msra.mxu0 0.0
        %830 = vmatprep.subr.mxu0 0.0
        %831 = vmatpush1.msra.mxu0 0.0
        %832 = vmatprep.subr.mxu0 0.0
        %833 = vmatpush1.msra.mxu0 0.0
        %834 = vmatprep.subr.mxu0 0.0
        %835 = vmatpush1.msra.mxu0 0.0
        %836 = vmatprep.subr.mxu0 0.0
        %837 = vmatpush1.msra.mxu0 0.0
        %838 = vmatprep.subr.mxu0 0.0
        %839 = vmatpush1.msra.mxu0 0.0
        %840 = vmatprep.subr.mxu0 0.0
        %841 = vmatpush1.msra.mxu0 0.0
        %842 = vmatprep.subr.mxu0 0.0
        %843 = vmatpush1.msra.mxu0 0.0
        %844 = vmatprep.subr.mxu0 0.0
        %845 = vmatpush1.msra.mxu0 0.0
        %846 = vmatprep.subr.mxu0 0.0
        %847 = vmatpush1.msra.mxu0 0.0
        %848 = vmatprep.subr.mxu0 0.0
        %849 = vmatpush1.msra.mxu0 0.0
        %850 = vmatprep.subr.mxu0 0.0
        %851 = vmatpush1.msra.mxu0 0.0
        %852 = vmatprep.subr.mxu0 0.0
        %853 = vmatpush1.msra.mxu0 0.0
        %854 = vmatprep.subr.mxu0 0.0
        %855 = vmatpush1.msra.mxu0 0.0
        %856 = vmatprep.subr.mxu0 0.0
        %857 = vmatpush1.msra.mxu0 0.0
        %858 = vmatprep.subr.mxu0 0.0
        %859 = vmatpush1.msra.mxu0 0.0
        %860 = vmatprep.subr.mxu0 0.0
        %861 = vmatpush1.msra.mxu0 0.0
        %862 = vmatprep.subr.mxu0 0.0
        %863 = vmatpush1.msra.mxu0 0.0
        %864 = vmatprep.mubr.f32.mxu0 0.0
        %865 = vmatmul.mubr.f32.gmra.mrb[0].mxu0 %v798
        %v866 = vpop.f32.mrb[0].mxu0
        %v867 = vadd.f32 %v795, %v866
        %v868 = vpop.f32.mrb[0].mxu0
        %869 = vdwg.mxu0
        %v870 = vld [vmem:[%s396] sm:$0xff]
        %v871 = vld [vmem:[%s396 + $0x8] sm:$0xff]
        %v872 = vld [vmem:[%s396 + $0x10] sm:$0xff]
        %v873 = vld [vmem:[%s396 + $0x18] sm:$0xff]
        %v874 = vld [vmem:[%s396 + $0x20] sm:$0xff]
        %v875 = vld [vmem:[%s396 + $0x28] sm:$0xff]
        %v876 = vld [vmem:[%s396 + $0x30] sm:$0xff]
        %v877 = vld [vmem:[%s396 + $0x38] sm:$0xff]
        %v878 = vld [vmem:[%s400] sm:$0x1]
        %v880 = vlaneseq
        %v881 = vshrl.u32 %v880, 7
        %v882 = vsub.s32 0, %v881
        %v883 = vrot.slane %v878, %v882
        %v886 = vsel %vm517, %v867, 0
        %888 = vmatprep.subr.mxu0 0.0
        %889 = vmatpush1.msra.mxu0 %v870
        %890 = vmatprep.subr.mxu0 0.0
        %891 = vmatpush1.msra.mxu0 %v871
        %892 = vmatprep.subr.mxu0 0.0
        %893 = vmatpush1.msra.mxu0 %v872
        %894 = vmatprep.subr.mxu0 0.0
        %895 = vmatpush1.msra.mxu0 %v873
        %896 = vmatprep.subr.mxu0 0.0
        %897 = vmatpush1.msra.mxu0 %v874
        %898 = vmatprep.subr.mxu0 0.0
        %899 = vmatpush1.msra.mxu0 %v875
        %900 = vmatprep.subr.mxu0 0.0
        %901 = vmatpush1.msra.mxu0 %v876
        %902 = vmatprep.subr.mxu0 0.0
        %903 = vmatpush1.msra.mxu0 %v877
        %904 = vmatprep.subr.mxu0 0.0
        %905 = vmatpush1.msra.mxu0 0.0
        %906 = vmatprep.subr.mxu0 0.0
        %907 = vmatpush1.msra.mxu0 0.0
        %908 = vmatprep.subr.mxu0 0.0
        %909 = vmatpush1.msra.mxu0 0.0
        %910 = vmatprep.subr.mxu0 0.0
        %911 = vmatpush1.msra.mxu0 0.0
        %912 = vmatprep.subr.mxu0 0.0
        %913 = vmatpush1.msra.mxu0 0.0
        %914 = vmatprep.subr.mxu0 0.0
        %915 = vmatpush1.msra.mxu0 0.0
        %916 = vmatprep.subr.mxu0 0.0
        %917 = vmatpush1.msra.mxu0 0.0
        %918 = vmatprep.subr.mxu0 0.0
        %919 = vmatpush1.msra.mxu0 0.0
        %920 = vmatprep.subr.mxu0 0.0
        %921 = vmatpush1.msra.mxu0 0.0
        %922 = vmatprep.subr.mxu0 0.0
        %923 = vmatpush1.msra.mxu0 0.0
        %924 = vmatprep.subr.mxu0 0.0
        %925 = vmatpush1.msra.mxu0 0.0
        %926 = vmatprep.subr.mxu0 0.0
        %927 = vmatpush1.msra.mxu0 0.0
        %928 = vmatprep.subr.mxu0 0.0
        %929 = vmatpush1.msra.mxu0 0.0
        %930 = vmatprep.subr.mxu0 0.0
        %931 = vmatpush1.msra.mxu0 0.0
        %932 = vmatprep.subr.mxu0 0.0
        %933 = vmatpush1.msra.mxu0 0.0
        %934 = vmatprep.subr.mxu0 0.0
        %935 = vmatpush1.msra.mxu0 0.0
        %936 = vmatprep.subr.mxu0 0.0
        %937 = vmatpush1.msra.mxu0 0.0
        %938 = vmatprep.subr.mxu0 0.0
        %939 = vmatpush1.msra.mxu0 0.0
        %940 = vmatprep.subr.mxu0 0.0
        %941 = vmatpush1.msra.mxu0 0.0
        %942 = vmatprep.subr.mxu0 0.0
        %943 = vmatpush1.msra.mxu0 0.0
        %944 = vmatprep.subr.mxu0 0.0
        %945 = vmatpush1.msra.mxu0 0.0
        %946 = vmatprep.subr.mxu0 0.0
        %947 = vmatpush1.msra.mxu0 0.0
        %948 = vmatprep.subr.mxu0 0.0
        %949 = vmatpush1.msra.mxu0 0.0
        %950 = vmatprep.subr.mxu0 0.0
        %951 = vmatpush1.msra.mxu0 0.0
        %952 = vmatprep.mubr.f32.mxu0 0.0
        %953 = vmatmul.mubr.f32.gmra.mrb[0].mxu0 %v886
        %v954 = vpop.f32.mrb[0].mxu0
        %v955 = vadd.f32 %v883, %v954
        %v956 = vpop.f32.mrb[0].mxu0
        %957 = vdwg.mxu0
        %s958 = scalar_lea.vmem %s396, 64
        %v959 = vld [vmem:[%s958] sm:$0xff]
        %v960 = vld [vmem:[%s958 + $0x8] sm:$0xff]
        %v961 = vld [vmem:[%s958 + $0x10] sm:$0xff]
        %v962 = vld [vmem:[%s958 + $0x18] sm:$0xff]
        %v963 = vld [vmem:[%s958 + $0x20] sm:$0xff]
        %v964 = vld [vmem:[%s958 + $0x28] sm:$0xff]
        %v965 = vld [vmem:[%s958 + $0x30] sm:$0xff]
        %v966 = vld [vmem:[%s958 + $0x38] sm:$0xff]
        %s967 = scalar_lea.vmem %s400, 1
        %v968 = vld [vmem:[%s967] sm:$0x1]
        %v970 = vlaneseq
        %v971 = vshrl.u32 %v970, 7
        %v972 = vsub.s32 0, %v971
        %v973 = vrot.slane %v968, %v972
        %975 = vmatprep.subr.mxu0 0.0
        %976 = vmatpush1.msra.mxu0 %v959
        %977 = vmatprep.subr.mxu0 0.0
        %978 = vmatpush1.msra.mxu0 %v960
        %979 = vmatprep.subr.mxu0 0.0
        %980 = vmatpush1.msra.mxu0 %v961
        %981 = vmatprep.subr.mxu0 0.0
        %982 = vmatpush1.msra.mxu0 %v962
        %983 = vmatprep.subr.mxu0 0.0
        %984 = vmatpush1.msra.mxu0 %v963
        %985 = vmatprep.subr.mxu0 0.0
        %986 = vmatpush1.msra.mxu0 %v964
        %987 = vmatprep.subr.mxu0 0.0
        %988 = vmatpush1.msra.mxu0 %v965
        %989 = vmatprep.subr.mxu0 0.0
        %990 = vmatpush1.msra.mxu0 %v966
        %991 = vmatprep.subr.mxu0 0.0
        %992 = vmatpush1.msra.mxu0 0.0
        %993 = vmatprep.subr.mxu0 0.0
        %994 = vmatpush1.msra.mxu0 0.0
        %995 = vmatprep.subr.mxu0 0.0
        %996 = vmatpush1.msra.mxu0 0.0
        %997 = vmatprep.subr.mxu0 0.0
        %998 = vmatpush1.msra.mxu0 0.0
        %999 = vmatprep.subr.mxu0 0.0
        %1000 = vmatpush1.msra.mxu0 0.0
        %1001 = vmatprep.subr.mxu0 0.0
        %1002 = vmatpush1.msra.mxu0 0.0
        %1003 = vmatprep.subr.mxu0 0.0
        %1004 = vmatpush1.msra.mxu0 0.0
        %1005 = vmatprep.subr.mxu0 0.0
        %1006 = vmatpush1.msra.mxu0 0.0
        %1007 = vmatprep.subr.mxu0 0.0
        %1008 = vmatpush1.msra.mxu0 0.0
        %1009 = vmatprep.subr.mxu0 0.0
        %1010 = vmatpush1.msra.mxu0 0.0
        %1011 = vmatprep.subr.mxu0 0.0
        %1012 = vmatpush1.msra.mxu0 0.0
        %1013 = vmatprep.subr.mxu0 0.0
        %1014 = vmatpush1.msra.mxu0 0.0
        %1015 = vmatprep.subr.mxu0 0.0
        %1016 = vmatpush1.msra.mxu0 0.0
        %1017 = vmatprep.subr.mxu0 0.0
        %1018 = vmatpush1.msra.mxu0 0.0
        %1019 = vmatprep.subr.mxu0 0.0
        %1020 = vmatpush1.msra.mxu0 0.0
        %1021 = vmatprep.subr.mxu0 0.0
        %1022 = vmatpush1.msra.mxu0 0.0
        %1023 = vmatprep.subr.mxu0 0.0
        %1024 = vmatpush1.msra.mxu0 0.0
        %1025 = vmatprep.subr.mxu0 0.0
        %1026 = vmatpush1.msra.mxu0 0.0
        %1027 = vmatprep.subr.mxu0 0.0
        %1028 = vmatpush1.msra.mxu0 0.0
        %1029 = vmatprep.subr.mxu0 0.0
        %1030 = vmatpush1.msra.mxu0 0.0
        %1031 = vmatprep.subr.mxu0 0.0
        %1032 = vmatpush1.msra.mxu0 0.0
        %1033 = vmatprep.subr.mxu0 0.0
        %1034 = vmatpush1.msra.mxu0 0.0
        %1035 = vmatprep.subr.mxu0 0.0
        %1036 = vmatpush1.msra.mxu0 0.0
        %1037 = vmatprep.subr.mxu0 0.0
        %1038 = vmatpush1.msra.mxu0 0.0
        %1039 = vmatprep.mubr.f32.mxu0 0.0
        %1040 = vmatmul.mubr.f32.gmra.mrb[0].mxu0 %v886
        %v1041 = vpop.f32.mrb[0].mxu0
        %v1042 = vadd.f32 %v973, %v1041
        %v1043 = vpop.f32.mrb[0].mxu0
        %1044 = vdwg.mxu0
        %v1045 = vxor.u32 %v1042, 2147483648
        %v1046 = vmul.f32 %v1045, 1.442695
        %v1047 = vpow.pop %v1046
        %v1048 = vadd.f32 %v1047, 1.0
        %v1049 = vrcp.pop %v1048
        %v1050 = vmul.f32 1.0, %v1049
        %v1051 = vmin.f32 %v1042, 0.0
        %v1052 = vand.u32 2147483647, %v1042
        %v1053 = vsub.f32 0.0, %v1052
        %v1054 = vmul.f32 %v1053, 1.442695
        %v1055 = vpow.pop %v1054
        %v1056 = vadd.f32 %v1055, 1.0
        %v1057 = vlog2.pop %v1056
        %v1058 = vmul.f32 %v1057, 0.6931472
        %v1059 = vsub.f32 %v1051, %v1058
        %v1060 = vmul.f32 %v413, %v1050
        %v1061 = vsub.f32 1.0, %v1050
        %v1062 = vmul.f32 %v1061, %v955
        %v1063 = vadd.f32 %v1060, %v1062
        %v1064 = vadd.f32 %v1063, %v414
        %1065 = vst.msk [vmem:[#allocation2] sm:$0xff] %vm424, %v1064
        %v1066 = vld [vmem:[#allocation3] sm:$0xff]
        %v1067 = vmul.f32 %v412, %v1059
        %v1068 = vsel %vm424, %v1067, 0.0
        %1069 = vadd.xlane.f32.xlu0 %v1068
        %v1070 = vpop.xlane.xlu0 %1069
        %v1071 = vadd.f32 %v1066, %v1070
        %vm1072 = vcmask 7168
        %1073 = vst.msk [vmem:[#allocation3] sm:$0xff] %vm1072, %v1071
        %p1074 = scmp.eq.s32.totalorder %s24, 2
        // Predicated region
        $region57: #{tpu_custom_call.1} parent=47 // pred_check
          %p1075 = pneg %p1074
        $region58: #{tpu_custom_call.1} parent=47 // pred_check_branch
          %1077 = sbr.rel (%p1075) target = $region60
        $region59: #{tpu_custom_call.1} parent=47 // pred_region
          %v1078 = vld [vmem:[#allocation2] sm:$0xff]
          %1079 = vst.msk [vmem:[#allocation7] sm:$0xff] %vm424, %v1078
          %v1080 = vld [vmem:[#allocation3] sm:$0xff]
          %1081 = vst.msk [vmem:[%s8] sm:$0xff] %vm1072, %v1080
        $region60: #{tpu_custom_call.1} parent=47 // pred_fallthru
          _
        // Predicated region
        $region61: #{tpu_custom_call.1} parent=47 // pred_check
          %p1082 = pneg %p214
        $region62: #{tpu_custom_call.1} parent=47 // pred_check_branch
          %1084 = sbr.rel (%p1082) target = $region64
        $region63: #{tpu_custom_call.1} parent=47 // pred_region
          %s1086 = ssub.s32 128, 128
          %1087 = vsyncadd [#allocation6], %s1086
          %s1089 = sshll.u32 [#allocation7], 4
          %s1090 = int_to_ptr.vmem [resolvable:$true] %s1089
          %1092 = dma.vmem_to_hbm [thread:$0]  %s1090, 128, %s7, [#allocation6]
        $region64: #{tpu_custom_call.1} parent=47 // pred_fallthru
          _
        // Predicated region
        $region65: #{tpu_custom_call.1} parent=47 // pred_check
          %p1093 = pneg %p235
        $region66: #{tpu_custom_call.1} parent=47 // pred_check_branch
          %1095 = sbr.rel (%p1093) target = $region68
        $region67: #{tpu_custom_call.1} parent=47 // pred_region
          _
        $region68: #{tpu_custom_call.1} parent=47 // pred_fallthru
          _
        // Predicated region
        $region69: #{tpu_custom_call.1} parent=47 // pred_check
          %p1096 = pneg %p214
        $region70: #{tpu_custom_call.1} parent=47 // pred_check_branch
          %1098 = sbr.rel (%p1096) target = $region72
        $region71: #{tpu_custom_call.1} parent=47 // pred_region
          %1099 = dma.done [#allocation6], 128
        $region72: #{tpu_custom_call.1} parent=47 // pred_fallthru
          _
        // Predicated region
        $region73: #{tpu_custom_call.1} parent=47 // pred_check
          %p1100 = pneg %p235
        $region74: #{tpu_custom_call.1} parent=47 // pred_check_branch
          %1102 = sbr.rel (%p1100) target = $region76
        $region75: #{tpu_custom_call.1} parent=47 // pred_region
          _
        $region76: #{tpu_custom_call.1} parent=47 // pred_fallthru
          _
      $region48: #{tpu_custom_call.1} parent=5 // pred_fallthru
        _
      %p1103 = scmp.le.s32.totalorder 2, %s19
      // Predicated region
      $region77: #{tpu_custom_call.1} parent=5 // pred_check
        %p1104 = pneg %p1103
      $region78: #{tpu_custom_call.1} parent=5 // pred_check_branch
        %1106 = sbr.rel (%p1104) target = $region80
      $region79: #{tpu_custom_call.1} parent=5 // pred_region
        %s1107 = ssub.s32 %s19, 2
      $region80: #{tpu_custom_call.1} parent=5 // pred_fallthru
        _
    $region6: #{tpu_custom_call.1} parent=1 // loop_footer
      %s23 = sadd.s32 1, %s19
    $region7: #{tpu_custom_call.1} parent=1 // loop_footer_branch
      %18 = sbr.rel target = $region3
    $region8: #{tpu_custom_call.1} parent=1 // loop_exit
      _
    %1108 = vsyncpa [#allocation5], 1
    %s1109 = scalar_lea.sflag [#allocation5], 1
    %1110 = vsyncpa %s1109, 1
    %1111 = vsyncpa [#allocation6], 1
    %s1112 = scalar_lea.sflag [#allocation6], 1
    %1113 = vsyncpa %s1112, 1

</llo_original>
